<compile_context>
chip_gen: v6e
topology: v6e:2x2x1
jax: 0.10.0
libtpu: 0.0.40
codegen_flags: <defaults>
</compile_context>

<pallas_src>
import functools

import jax
import jax.numpy as jnp
from jax import lax
from jax.experimental import pallas as pl
from jax.experimental.pallas import tpu as pltpu

LANE = 128     # TPU lane width
SUBLANE = 8    # TPU sublane width


def _round_up(x, m):
    return (x + m - 1) // m * m


def xlstm_kernel(x_ref, wih_ref, whh_ref, b_ref, wa_ref, ba_ref, wc_ref,
                 wfc_ref, bfc_ref, out_ref,
                 zx_scr, hs_scr, h_scr, c_scr, m_scr, l_scr, acc_scr,
                 *, t_chunk, hidden_p, unroll):
    """One (batch block, time chunk) grid step.

    x_ref   : (t_chunk, B_TILE, I)   time-major input chunk (matmul dtype)
    wih_ref : (I, 4*H_p)             LSTM input weights^T, gate-padded
    whh_ref : (H_p, 4*H_p)           LSTM hidden weights^T, gate-padded
    b_ref   : (1, 4*H_p)             bias_ih + bias_hh, gate-padded (f32)
    wa_ref  : (H_p, A_p)             attention Linear weight^T
    ba_ref  : (1, A_p)               attention Linear bias (f32)
    wc_ref  : (1, A_p)               context_vector weight as a row (f32)
    wfc_ref : (1, H_p)               fc weight as a row (f32)
    bfc_ref : (1, 1)                 fc bias (f32)
    out_ref : (B_TILE, 1)            written on the last time chunk
    zx_scr  : (t_chunk, B_TILE, 4H_p) f32  hoisted input projection (time-major)
    hs_scr  : (t_chunk, B_TILE, H_p)  f32  this chunk's hidden states
    h/c/acc : (B_TILE, H_p) f32 ; m/l : (B_TILE, 1) f32  (carried across chunks)
    """
    t_idx = pl.program_id(1)
    n_t = pl.num_programs(1)
    H = hidden_p
    bt = h_scr.shape[0]
    in_dim = x_ref.shape[2]

    # ---- init recurrent + online-softmax state at the first time chunk ------
    @pl.when(t_idx == 0)
    def _init():
        h_scr[...] = jnp.zeros_like(h_scr)
        c_scr[...] = jnp.zeros_like(c_scr)
        acc_scr[...] = jnp.zeros_like(acc_scr)
        l_scr[...] = jnp.zeros_like(l_scr)
        m_scr[...] = jnp.full_like(m_scr, -jnp.inf)

    # ---- hoisted input projection: one big MXU matmul per chunk, written ----
    # ---- into a TIME-MAJOR scratch so per-step reads are full tiles      ----
    x2 = x_ref[...].reshape(t_chunk * bt, in_dim)      # layout-trivial: bt % 8 == 0
    zx2 = (jnp.dot(x2, wih_ref[...], preferred_element_type=jnp.float32)
           + b_ref[...])                               # (t_chunk*bt, 4H_p) f32
    zx_scr[...] = zx2.reshape(t_chunk, bt, 4 * H)

    whh = whh_ref[...]
    mdt = whh.dtype                                    # matmul operand dtype

    # ---- serial recurrence: only h @ Whh + gates on the critical path -------
    # TODO(synk): hold Whh resident in MXU weight regs via
    # pltpu.matmul_push_rhs / matmul_acc_lhs / matmul_pop (per-chunk push).
    def group(g, carry):
        h, c = carry
        for u in range(unroll):                        # explicit small unroll
            tt = g * unroll + u
            z = zx_scr[tt] + jnp.dot(h.astype(mdt), whh,
                                     preferred_element_type=jnp.float32)
            # PyTorch gate order (i, f, g, o); slices are 128-aligned (H_p%128==0)
            i_g = jax.nn.sigmoid(z[:, 0 * H:1 * H])
            f_g = jax.nn.sigmoid(z[:, 1 * H:2 * H])
            g_g = jnp.tanh(z[:, 2 * H:3 * H])
            o_g = jax.nn.sigmoid(z[:, 3 * H:4 * H])
            c = f_g * c + i_g * g_g
            h = o_g * jnp.tanh(c)
            hs_scr[tt] = h                             # stash for batched scoring
        return (h, c)

    h, c = lax.fori_loop(0, t_chunk // unroll, group, (h_scr[...], c_scr[...]))
    h_scr[...] = h
    c_scr[...] = c

    # ---- batched attention scoring for the chunk (off the serial path) ------
    hs = hs_scr[...]                                   # (t_chunk, bt, H_p) f32
    hs2 = hs.reshape(t_chunk * bt, H)
    att = jnp.tanh(jnp.dot(hs2.astype(mdt), wa_ref[...],
                           preferred_element_type=jnp.float32) + ba_ref[...])
    # N=1 "matmul" as broadcast-multiply + lane-sum (VPU/XLU, not MXU).
    s = jnp.sum(att * wc_ref[...], axis=-1, keepdims=True)   # (t_chunk*bt, 1)
    s = s.reshape(t_chunk, bt, 1)

    # ---- vectorized online-softmax update over the chunk ---------------------
    m_prev = m_scr[...]
    m_new = jnp.maximum(m_prev, jnp.max(s, axis=0))           # (bt, 1)
    alpha = jnp.exp(m_prev - m_new)
    p = jnp.exp(s - m_new)                                    # (t_chunk, bt, 1)
    l_scr[...] = alpha * l_scr[...] + jnp.sum(p, axis=0)
    acc_scr[...] = alpha * acc_scr[...] + jnp.sum(p * hs, axis=0)
    m_scr[...] = m_new

    # ---- finalize: context vector + fc head on the last chunk ---------------
    @pl.when(t_idx == n_t - 1)
    def _finalize():
        ctx = acc_scr[...] * pl.reciprocal(l_scr[...], approx=True)  # (bt, H_p)
        out_ref[...] = (jnp.sum(ctx * wfc_ref[...], axis=-1, keepdims=True)
                        + bfc_ref[...])                               # (bt, 1)


def xlstm_forward(x, params, *, b_tile=None, t_chunk=None,
                  matmul_dtype=jnp.bfloat16):
    """x: (B, T, I) float32, batch-first like the PyTorch module."""
    B, T, I = x.shape
    H = params["whh_t"].shape[0]
    A = params["wa_t"].shape[1]
    f32 = jnp.float32

    H_p = _round_up(H, LANE)
    A_p = _round_up(A, LANE)

    # Batch tile: sublane-aligned, grows with batch to fill MXU rows, capped at
    # 128 so medium batches keep >=2 blocks for the two TensorCores on v7x.
    if b_tile is None:
        b_tile = min(_round_up(B, SUBLANE), 128)
    b_tile = _round_up(b_tile, SUBLANE)
    B_p = _round_up(B, b_tile)

    # Time chunk: largest multiple-of-8 divisor of T up to 256 (amortizes the
    # ~0.35us per-grid-step overhead), else the whole sequence.
    if t_chunk is None:
        t_chunk = T
        for cand in range(min(T, 256), 7, -1):
            if T % cand == 0 and cand % SUBLANE == 0:
                t_chunk = cand
                break
    assert T % t_chunk == 0
    unroll = 4 if t_chunk % 4 == 0 else (2 if t_chunk % 2 == 0 else 1)

    # ---- zero-pad weights; padded hidden/attention units stay exactly 0 -----
    def pad_gates(w):  # (rows, 4H) -> (rows, 4*H_p), per-gate zero-padded cols
        return jnp.concatenate(
            [jnp.pad(w[:, k * H:(k + 1) * H], ((0, 0), (0, H_p - H)))
             for k in range(4)], axis=1)

    wih_p = pad_gates(params["wih_t"]).astype(matmul_dtype)           # (I, 4H_p)
    whh_p = jnp.pad(pad_gates(params["whh_t"]),
                    ((0, H_p - H), (0, 0))).astype(matmul_dtype)      # (H_p, 4H_p)
    b_p = pad_gates(params["b"]).astype(f32)                          # (1, 4H_p)
    wa_p = jnp.pad(params["wa_t"],
                   ((0, H_p - H), (0, A_p - A))).astype(matmul_dtype)  # (H_p, A_p)
    ba_p = jnp.pad(params["ba"], ((0, 0), (0, A_p - A))).astype(f32)   # (1, A_p)
    wc_row = jnp.pad(params["wc_t"].T, ((0, 0), (0, A_p - A))).astype(f32)   # (1, A_p)
    wfc_row = jnp.pad(params["wfc_t"].T, ((0, 0), (0, H_p - H))).astype(f32)  # (1, H_p)
    bfc = params["bfc"].astype(f32)                                   # (1, 1)

    # Pad batch, transpose ONCE to time-major, cast streaming input to the
    # matmul dtype (halves HBM->VMEM traffic when bf16).
    x_p = jnp.pad(x, ((0, B_p - B), (0, 0), (0, 0)))
    x_tbi = jnp.transpose(x_p, (1, 0, 2)).astype(matmul_dtype)        # (T, B_p, I)

    grid = (B_p // b_tile, T // t_chunk)

    def full_spec(shape):   # whole small array resident in VMEM for all steps
        return pl.BlockSpec(shape, lambda b, t: (0, 0))

    kernel = functools.partial(xlstm_kernel, t_chunk=t_chunk, hidden_p=H_p,
                               unroll=unroll)

    # Rough VMEM budget -> scoped limit, clamped to [32 MiB, 64 MiB] so the
    # same configuration stays inside v7x's 64 MiB while letting v5e/v6e grow.
    esz = jnp.dtype(matmul_dtype).itemsize
    est = (2 * t_chunk * b_tile * max(I, LANE) * esz        # x block, double-buffered
           + t_chunk * b_tile * 4 * H_p * 4                 # zx scratch
           + t_chunk * b_tile * H_p * 4                     # hs scratch
           + 3 * b_tile * H_p * 4                           # h, c, acc
           + (I + H_p) * 4 * H_p * esz + H_p * A_p * esz    # Wih, Whh, Wa
           + (4 * H_p + 3 * A_p + 2 * H_p + 2) * 4)         # small vectors
    vmem_limit = int(min(max(2 * est, 32 * 1024 * 1024), 64 * 1024 * 1024))

    out_p = pl.pallas_call(
        kernel,
        out_shape=jax.ShapeDtypeStruct((B_p, 1), f32),
        grid_spec=pltpu.PrefetchScalarGridSpec(
            num_scalar_prefetch=0,
            grid=grid,
            in_specs=[
                pl.BlockSpec((t_chunk, b_tile, I), lambda b, t: (t, b, 0)),
                full_spec(wih_p.shape), full_spec(whh_p.shape),
                full_spec(b_p.shape), full_spec(wa_p.shape),
                full_spec(ba_p.shape), full_spec(wc_row.shape),
                full_spec(wfc_row.shape), full_spec(bfc.shape),
            ],
            out_specs=pl.BlockSpec((b_tile, 1), lambda b, t: (b, 0)),
            scratch_shapes=[
                pltpu.VMEM((t_chunk, b_tile, 4 * H_p), f32),  # zx (time-major)
                pltpu.VMEM((t_chunk, b_tile, H_p), f32),      # chunk hidden states
                pltpu.VMEM((b_tile, H_p), f32),               # h carry
                pltpu.VMEM((b_tile, H_p), f32),               # c carry
                pltpu.VMEM((b_tile, 1), f32),                 # running max m
                pltpu.VMEM((b_tile, 1), f32),                 # running denom l
                pltpu.VMEM((b_tile, H_p), f32),               # weighted accumulator
            ]),
        compiler_params=pltpu.CompilerParams(
            dimension_semantics=("parallel", "arbitrary"),
            vmem_limit_bytes=vmem_limit),
    )(x_tbi, wih_p, whh_p, b_p, wa_p, ba_p, wc_row, wfc_row, bfc)

    return out_p[:B]


def init_params(key, input_size, hidden_size, attention_size):
    """Deterministic synthetic parameters with the PyTorch module's shapes."""
    ks = jax.random.split(key, 9)
    H, I, A = hidden_size, input_size, attention_size
    u = lambda k, shape, s: jax.random.uniform(k, shape, jnp.float32, -s, s)
    sH = 1.0 / jnp.sqrt(H)
    w_ih = u(ks[0], (4 * H, I), sH)                 # torch lstm.weight_ih_l0
    w_hh = u(ks[1], (4 * H, H), sH)                 # torch lstm.weight_hh_l0
    b_ih = u(ks[2], (4 * H,), sH)
    b_hh = u(ks[3], (4 * H,), sH)
    w_attn = u(ks[4], (A, H), 1.0 / jnp.sqrt(H))    # attention Linear
    b_attn = u(ks[5], (A,), 1.0 / jnp.sqrt(H))
    w_ctx = u(ks[6], (1, A), 1.0 / jnp.sqrt(A))     # context_vector (no bias)
    w_fc = u(ks[7], (1, H), 1.0 / jnp.sqrt(H))      # fc
    b_fc = u(ks[8], (1,), 1.0 / jnp.sqrt(H))
    return {
        "wih_t": w_ih.T,                            # (I, 4H)
        "whh_t": w_hh.T,                            # (H, 4H)
        "b": (b_ih + b_hh).reshape(1, 4 * H),       # (1, 4H)
        "wa_t": w_attn.T,                           # (H, A)
        "ba": b_attn.reshape(1, A),                 # (1, A)
        "wc_t": w_ctx.T,                            # (A, 1)
        "wfc_t": w_fc.T,                            # (H, 1)
        "bfc": b_fc.reshape(1, 1),                  # (1, 1)
    }


def xlstm_reference(x, params):
    """Pure-JAX f32 reference matching torch semantics (sanity check)."""
    B, T, _ = x.shape
    H = params["whh_t"].shape[0]

    def step(carry, x_t):
        h, c = carry
        z = x_t @ params["wih_t"] + h @ params["whh_t"] + params["b"]
        i_g = jax.nn.sigmoid(z[:, 0 * H:1 * H])
        f_g = jax.nn.sigmoid(z[:, 1 * H:2 * H])
        g_g = jnp.tanh(z[:, 2 * H:3 * H])
        o_g = jax.nn.sigmoid(z[:, 3 * H:4 * H])
        c = f_g * c + i_g * g_g
        h = o_g * jnp.tanh(c)
        return (h, c), h

    h0 = jnp.zeros((B, H), jnp.float32)
    c0 = jnp.zeros((B, H), jnp.float32)
    _, hs = lax.scan(step, (h0, c0), jnp.transpose(x, (1, 0, 2)))
    lo = jnp.transpose(hs, (1, 0, 2))                               # (B, T, H)
    scores = jnp.tanh(lo @ params["wa_t"] + params["ba"])
    logits = scores @ params["wc_t"]                                # (B, T, 1)
    w = jax.nn.softmax(logits, axis=1)
    ctx = jnp.sum(lo * w, axis=1)                                   # (B, H)
    return ctx @ params["wfc_t"] + params["bfc"]


if __name__ == "__main__":
    B, T, I, H, A = 2, 8, 4, 32, 16
    key = jax.random.PRNGKey(0)
    k_x, k_p = jax.random.split(key)
    x = jax.random.normal(k_x, (B, T, I), jnp.float32)
    params = init_params(k_p, I, H, A)

    ref = jax.block_until_ready(xlstm_reference(x, params))

    # f32-operand path: tight check of the kernel structure / padding / pooling.
    out_f32 = jax.block_until_ready(
        xlstm_forward(x, params, matmul_dtype=jnp.float32))
    assert out_f32.shape == (B, 1), out_f32.shape
    assert jnp.allclose(out_f32, ref, atol=2e-3, rtol=2e-3), (out_f32, ref)

    # Default bf16-operand / f32-accumulate path (MXU-friendly on v5e/v6e/v7x).
    out_bf16 = jax.block_until_ready(xlstm_forward(x, params))
    assert out_bf16.shape == (B, 1), out_bf16.shape
    assert jnp.allclose(out_bf16, ref, atol=5e-2, rtol=5e-2), (out_bf16, ref)

    print("KERNEL_OK")
</pallas_src>

<mosaic_0001>
module attributes {stable_mosaic.version = 11 : i64} {
  func.func @xlstm_kernel(%arg0: i32, %arg1: i32, %arg2: memref<8x8x4xf32, #tpu.memory_space<vmem>>, %arg3: memref<4x512xf32, #tpu.memory_space<vmem>>, %arg4: memref<128x512xf32, #tpu.memory_space<vmem>>, %arg5: memref<1x512xf32, #tpu.memory_space<vmem>>, %arg6: memref<128x128xf32, #tpu.memory_space<vmem>>, %arg7: memref<1x128xf32, #tpu.memory_space<vmem>>, %arg8: memref<1x128xf32, #tpu.memory_space<vmem>>, %arg9: memref<1x128xf32, #tpu.memory_space<vmem>>, %arg10: memref<1x1xf32, #tpu.memory_space<vmem>>, %arg11: memref<8x1xf32, #tpu.memory_space<vmem>>, %arg12: memref<8x8x512xf32, #tpu.memory_space<vmem>>, %arg13: memref<8x8x128xf32, #tpu.memory_space<vmem>>, %arg14: memref<8x128xf32, #tpu.memory_space<vmem>>, %arg15: memref<8x128xf32, #tpu.memory_space<vmem>>, %arg16: memref<8x1xf32, #tpu.memory_space<vmem>>, %arg17: memref<8x1xf32, #tpu.memory_space<vmem>>, %arg18: memref<8x128xf32, #tpu.memory_space<vmem>>) attributes {dimension_semantics = [#tpu.dimension_semantics<parallel>, #tpu.dimension_semantics<arbitrary>], iteration_bounds = array<i64: 1, 1>, scalar_prefetch = 0 : i64, scratch_operands = 7 : i64, tpu.core_type = #tpu.core_type<tc>, window_params = [{transform_indices = @transform_0, window_bounds = array<i64: 8, 8, 4>}, {pipeline_mode = #tpu.pipeline_mode<synchronous>, transform_indices = @transform_1, window_bounds = array<i64: 4, 512>}, {pipeline_mode = #tpu.pipeline_mode<synchronous>, transform_indices = @transform_2, window_bounds = array<i64: 128, 512>}, {pipeline_mode = #tpu.pipeline_mode<synchronous>, transform_indices = @transform_3, window_bounds = array<i64: 1, 512>}, {pipeline_mode = #tpu.pipeline_mode<synchronous>, transform_indices = @transform_4, window_bounds = array<i64: 128, 128>}, {pipeline_mode = #tpu.pipeline_mode<synchronous>, transform_indices = @transform_5, window_bounds = array<i64: 1, 128>}, {pipeline_mode = #tpu.pipeline_mode<synchronous>, transform_indices = @transform_6, window_bounds = array<i64: 1, 128>}, {pipeline_mode = #tpu.pipeline_mode<synchronous>, transform_indices = @transform_7, window_bounds = array<i64: 1, 128>}, {pipeline_mode = #tpu.pipeline_mode<synchronous>, transform_indices = @transform_8, window_bounds = array<i64: 1, 1>}, {transform_indices = @transform_9, window_bounds = array<i64: 8, 1>}]} {
    %c0_i32 = arith.constant 0 : i32
    %0 = arith.cmpi eq, %arg1, %c0_i32 : i32
    %1 = arith.extui %0 : i1 to i32
    %c0_i32_0 = arith.constant 0 : i32
    %2 = arith.cmpi ne, %1, %c0_i32_0 : i32
    scf.if %2 {
      %cst_50 = arith.constant 0.000000e+00 : f32
      %59 = vector.broadcast %cst_50 : f32 to vector<8x128xf32>
      %c0_51 = arith.constant 0 : index
      %c0_52 = arith.constant 0 : index
      %60 = vector.load %arg14[%c0_51, %c0_52] : memref<8x128xf32, #tpu.memory_space<vmem>>, vector<8x128xf32>
      tpu.vector_store %arg14[%c0_51, %c0_52], %59 {strides = array<i32>} : memref<8x128xf32, #tpu.memory_space<vmem>>, vector<8x128xf32>,
      %cst_53 = arith.constant 0.000000e+00 : f32
      %61 = vector.broadcast %cst_53 : f32 to vector<8x128xf32>
      %c0_54 = arith.constant 0 : index
      %c0_55 = arith.constant 0 : index
      %62 = vector.load %arg15[%c0_54, %c0_55] : memref<8x128xf32, #tpu.memory_space<vmem>>, vector<8x128xf32>
      tpu.vector_store %arg15[%c0_54, %c0_55], %61 {strides = array<i32>} : memref<8x128xf32, #tpu.memory_space<vmem>>, vector<8x128xf32>,
      %cst_56 = arith.constant 0.000000e+00 : f32
      %63 = vector.broadcast %cst_56 : f32 to vector<8x128xf32>
      %c0_57 = arith.constant 0 : index
      %c0_58 = arith.constant 0 : index
      %64 = vector.load %arg18[%c0_57, %c0_58] : memref<8x128xf32, #tpu.memory_space<vmem>>, vector<8x128xf32>
      tpu.vector_store %arg18[%c0_57, %c0_58], %63 {strides = array<i32>} : memref<8x128xf32, #tpu.memory_space<vmem>>, vector<8x128xf32>,
      %cst_59 = arith.constant 0.000000e+00 : f32
      %65 = vector.broadcast %cst_59 : f32 to vector<8x1xf32>
      %c0_60 = arith.constant 0 : index
      %c0_61 = arith.constant 0 : index
      %66 = vector.load %arg17[%c0_60, %c0_61] : memref<8x1xf32, #tpu.memory_space<vmem>>, vector<8x1xf32>
      tpu.vector_store %arg17[%c0_60, %c0_61], %65 {strides = array<i32>} : memref<8x1xf32, #tpu.memory_space<vmem>>, vector<8x1xf32>,
      %cst_62 = arith.constant 0xFF800000 : f32
      %67 = vector.broadcast %cst_62 : f32 to vector<8x1xf32>
      %c0_63 = arith.constant 0 : index
      %c0_64 = arith.constant 0 : index
      %68 = vector.load %arg16[%c0_63, %c0_64] : memref<8x1xf32, #tpu.memory_space<vmem>>, vector<8x1xf32>
      tpu.vector_store %arg16[%c0_63, %c0_64], %67 {strides = array<i32>} : memref<8x1xf32, #tpu.memory_space<vmem>>, vector<8x1xf32>,
    } else {
    }
    %c0 = arith.constant 0 : index
    %c0_1 = arith.constant 0 : index
    %c0_2 = arith.constant 0 : index
    %3 = vector.load %arg2[%c0, %c0_1, %c0_2] : memref<8x8x4xf32, #tpu.memory_space<vmem>>, vector<8x8x4xf32>
    %4 = vector.shape_cast %3 : vector<8x8x4xf32> to vector<64x4xf32>
    %c0_3 = arith.constant 0 : index
    %c0_4 = arith.constant 0 : index
    %5 = vector.load %arg3[%c0_3, %c0_4] : memref<4x512xf32, #tpu.memory_space<vmem>>, vector<4x512xf32>
    %cst = arith.constant dense<0.000000e+00> : vector<64x512xf32>
    %6 = tpu.matmul %4, %5, %cst {dimension_numbers = #tpu.dot_dimension_numbers<[1], [0], [0], [1], [0, 0, 1, 1], [], []>} : vector<64x4xf32>, vector<4x512xf32>, vector<64x512xf32> -> vector<64x512xf32>
    %c0_5 = arith.constant 0 : index
    %c0_6 = arith.constant 0 : index
    %7 = vector.load %arg5[%c0_5, %c0_6] : memref<1x512xf32, #tpu.memory_space<vmem>>, vector<1x512xf32>
    %8 = vector.broadcast %7 : vector<1x512xf32> to vector<64x512xf32>
    %9 = arith.addf %6, %8 : vector<64x512xf32>
    %10 = vector.shape_cast %9 : vector<64x512xf32> to vector<8x8x512xf32>
    %c0_7 = arith.constant 0 : index
    %c0_8 = arith.constant 0 : index
    %c0_9 = arith.constant 0 : index
    %11 = vector.load %arg12[%c0_7, %c0_8, %c0_9] : memref<8x8x512xf32, #tpu.memory_space<vmem>>, vector<8x8x512xf32>
    tpu.vector_store %arg12[%c0_7, %c0_8, %c0_9], %10 {strides = array<i32>} : memref<8x8x512xf32, #tpu.memory_space<vmem>>, vector<8x8x512xf32>,
    %c0_10 = arith.constant 0 : index
    %c0_11 = arith.constant 0 : index
    %12 = vector.load %arg4[%c0_10, %c0_11] : memref<128x512xf32, #tpu.memory_space<vmem>>, vector<128x512xf32>
    %c0_12 = arith.constant 0 : index
    %c0_13 = arith.constant 0 : index
    %13 = vector.load %arg14[%c0_12, %c0_13] : memref<8x128xf32, #tpu.memory_space<vmem>>, vector<8x128xf32>
    %c0_14 = arith.constant 0 : index
    %c0_15 = arith.constant 0 : index
    %14 = vector.load %arg15[%c0_14, %c0_15] : memref<8x128xf32, #tpu.memory_space<vmem>>, vector<8x128xf32>
    %c0_i32_16 = arith.constant 0 : i32
    %c2_i32 = arith.constant 2 : i32
    %15 = arith.addi %c0_i32_16, %c2_i32 : i32
    %c1_i32 = arith.constant 1 : i32
    %16:2 = scf.for %arg19 = %c0_i32_16 to %15 step %c1_i32 iter_args(%arg20 = %13, %arg21 = %14) -> (vector<8x128xf32>, vector<8x128xf32>)  : i32 {
      %c4_i32 = arith.constant 4 : i32
      %59 = arith.muli %arg19, %c4_i32 : i32
      %c0_i32_50 = arith.constant 0 : i32
      %60 = arith.addi %59, %c0_i32_50 : i32
      %61 = arith.index_cast %60 : i32 to index
      %c0_51 = arith.constant 0 : index
      %c0_52 = arith.constant 0 : index
      %62 = vector.load %arg12[%61, %c0_51, %c0_52] : memref<8x8x512xf32, #tpu.memory_space<vmem>>, vector<1x8x512xf32>
      %63 = vector.shape_cast %62 : vector<1x8x512xf32> to vector<8x512xf32>
      %cst_53 = arith.constant dense<0.000000e+00> : vector<8x512xf32>
      %64 = tpu.matmul %arg20, %12, %cst_53 {dimension_numbers = #tpu.dot_dimension_numbers<[1], [0], [0], [1], [0, 0, 1, 1], [], []>} : vector<8x128xf32>, vector<128x512xf32>, vector<8x512xf32> -> vector<8x512xf32>
      %65 = arith.addf %63, %64 : vector<8x512xf32>
      %66 = vector.extract_strided_slice %65 {offsets = [0, 0], sizes = [8, 128], strides = [1, 1]} : vector<8x512xf32> to vector<8x128xf32>
      %67 = arith.negf %66 : vector<8x128xf32>
      %68 = math.exp %67 : vector<8x128xf32>
      %cst_54 = arith.constant 1.000000e+00 : f32
      %69 = vector.broadcast %cst_54 : f32 to vector<8x128xf32>
      %70 = arith.addf %69, %68 : vector<8x128xf32>
      %71 = arith.divf %69, %70 : vector<8x128xf32>
      %72 = vector.extract_strided_slice %65 {offsets = [0, 128], sizes = [8, 128], strides = [1, 1]} : vector<8x512xf32> to vector<8x128xf32>
      %73 = arith.negf %72 : vector<8x128xf32>
      %74 = math.exp %73 : vector<8x128xf32>
      %cst_55 = arith.constant 1.000000e+00 : f32
      %75 = vector.broadcast %cst_55 : f32 to vector<8x128xf32>
      %76 = arith.addf %75, %74 : vector<8x128xf32>
      %77 = arith.divf %75, %76 : vector<8x128xf32>
      %78 = vector.extract_strided_slice %65 {offsets = [0, 256], sizes = [8, 128], strides = [1, 1]} : vector<8x512xf32> to vector<8x128xf32>
      %79 = math.tanh %78 : vector<8x128xf32>
      %80 = vector.extract_strided_slice %65 {offsets = [0, 384], sizes = [8, 128], strides = [1, 1]} : vector<8x512xf32> to vector<8x128xf32>
      %81 = arith.negf %80 : vector<8x128xf32>
      %82 = math.exp %81 : vector<8x128xf32>
      %cst_56 = arith.constant 1.000000e+00 : f32
      %83 = vector.broadcast %cst_56 : f32 to vector<8x128xf32>
      %84 = arith.addf %83, %82 : vector<8x128xf32>
      %85 = arith.divf %83, %84 : vector<8x128xf32>
      %86 = arith.mulf %77, %arg21 : vector<8x128xf32>
      %87 = arith.mulf %71, %79 : vector<8x128xf32>
      %88 = arith.addf %86, %87 : vector<8x128xf32>
      %89 = math.tanh %88 : vector<8x128xf32>
      %90 = arith.mulf %85, %89 : vector<8x128xf32>
      %91 = arith.index_cast %60 : i32 to index
      %c0_57 = arith.constant 0 : index
      %c0_58 = arith.constant 0 : index
      %92 = vector.load %arg13[%91, %c0_57, %c0_58] : memref<8x8x128xf32, #tpu.memory_space<vmem>>, vector<1x8x128xf32>
      %93 = vector.shape_cast %92 : vector<1x8x128xf32> to vector<8x128xf32>
      %94 = vector.shape_cast %90 : vector<8x128xf32> to vector<1x8x128xf32>
      tpu.vector_store %arg13[%91, %c0_57, %c0_58], %94 {strides = array<i32>} : memref<8x8x128xf32, #tpu.memory_space<vmem>>, vector<1x8x128xf32>,
      %c4_i32_59 = arith.constant 4 : i32
      %95 = arith.muli %arg19, %c4_i32_59 : i32
      %c1_i32_60 = arith.constant 1 : i32
      %96 = arith.addi %95, %c1_i32_60 : i32
      %97 = arith.index_cast %96 : i32 to index
      %c0_61 = arith.constant 0 : index
      %c0_62 = arith.constant 0 : index
      %98 = vector.load %arg12[%97, %c0_61, %c0_62] : memref<8x8x512xf32, #tpu.memory_space<vmem>>, vector<1x8x512xf32>
      %99 = vector.shape_cast %98 : vector<1x8x512xf32> to vector<8x512xf32>
      %cst_63 = arith.constant dense<0.000000e+00> : vector<8x512xf32>
      %100 = tpu.matmul %90, %12, %cst_63 {dimension_numbers = #tpu.dot_dimension_numbers<[1], [0], [0], [1], [0, 0, 1, 1], [], []>} : vector<8x128xf32>, vector<128x512xf32>, vector<8x512xf32> -> vector<8x512xf32>
      %101 = arith.addf %99, %100 : vector<8x512xf32>
      %102 = vector.extract_strided_slice %101 {offsets = [0, 0], sizes = [8, 128], strides = [1, 1]} : vector<8x512xf32> to vector<8x128xf32>
      %103 = arith.negf %102 : vector<8x128xf32>
      %104 = math.exp %103 : vector<8x128xf32>
      %cst_64 = arith.constant 1.000000e+00 : f32
      %105 = vector.broadcast %cst_64 : f32 to vector<8x128xf32>
      %106 = arith.addf %105, %104 : vector<8x128xf32>
      %107 = arith.divf %105, %106 : vector<8x128xf32>
      %108 = vector.extract_strided_slice %101 {offsets = [0, 128], sizes = [8, 128], strides = [1, 1]} : vector<8x512xf32> to vector<8x128xf32>
      %109 = arith.negf %108 : vector<8x128xf32>
      %110 = math.exp %109 : vector<8x128xf32>
      %cst_65 = arith.constant 1.000000e+00 : f32
      %111 = vector.broadcast %cst_65 : f32 to vector<8x128xf32>
      %112 = arith.addf %111, %110 : vector<8x128xf32>
      %113 = arith.divf %111, %112 : vector<8x128xf32>
      %114 = vector.extract_strided_slice %101 {offsets = [0, 256], sizes = [8, 128], strides = [1, 1]} : vector<8x512xf32> to vector<8x128xf32>
      %115 = math.tanh %114 : vector<8x128xf32>
      %116 = vector.extract_strided_slice %101 {offsets = [0, 384], sizes = [8, 128], strides = [1, 1]} : vector<8x512xf32> to vector<8x128xf32>
      %117 = arith.negf %116 : vector<8x128xf32>
      %118 = math.exp %117 : vector<8x128xf32>
      %cst_66 = arith.constant 1.000000e+00 : f32
      %119 = vector.broadcast %cst_66 : f32 to vector<8x128xf32>
      %120 = arith.addf %119, %118 : vector<8x128xf32>
      %121 = arith.divf %119, %120 : vector<8x128xf32>
      %122 = arith.mulf %113, %88 : vector<8x128xf32>
      %123 = arith.mulf %107, %115 : vector<8x128xf32>
      %124 = arith.addf %122, %123 : vector<8x128xf32>
      %125 = math.tanh %124 : vector<8x128xf32>
      %126 = arith.mulf %121, %125 : vector<8x128xf32>
      %127 = arith.index_cast %96 : i32 to index
      %c0_67 = arith.constant 0 : index
      %c0_68 = arith.constant 0 : index
      %128 = vector.load %arg13[%127, %c0_67, %c0_68] : memref<8x8x128xf32, #tpu.memory_space<vmem>>, vector<1x8x128xf32>
      %129 = vector.shape_cast %128 : vector<1x8x128xf32> to vector<8x128xf32>
      %130 = vector.shape_cast %126 : vector<8x128xf32> to vector<1x8x128xf32>
      tpu.vector_store %arg13[%127, %c0_67, %c0_68], %130 {strides = array<i32>} : memref<8x8x128xf32, #tpu.memory_space<vmem>>, vector<1x8x128xf32>,
      %c4_i32_69 = arith.constant 4 : i32
      %131 = arith.muli %arg19, %c4_i32_69 : i32
      %c2_i32_70 = arith.constant 2 : i32
      %132 = arith.addi %131, %c2_i32_70 : i32
      %133 = arith.index_cast %132 : i32 to index
      %c0_71 = arith.constant 0 : index
      %c0_72 = arith.constant 0 : index
      %134 = vector.load %arg12[%133, %c0_71, %c0_72] : memref<8x8x512xf32, #tpu.memory_space<vmem>>, vector<1x8x512xf32>
      %135 = vector.shape_cast %134 : vector<1x8x512xf32> to vector<8x512xf32>
      %cst_73 = arith.constant dense<0.000000e+00> : vector<8x512xf32>
      %136 = tpu.matmul %126, %12, %cst_73 {dimension_numbers = #tpu.dot_dimension_numbers<[1], [0], [0], [1], [0, 0, 1, 1], [], []>} : vector<8x128xf32>, vector<128x512xf32>, vector<8x512xf32> -> vector<8x512xf32>
      %137 = arith.addf %135, %136 : vector<8x512xf32>
      %138 = vector.extract_strided_slice %137 {offsets = [0, 0], sizes = [8, 128], strides = [1, 1]} : vector<8x512xf32> to vector<8x128xf32>
      %139 = arith.negf %138 : vector<8x128xf32>
      %140 = math.exp %139 : vector<8x128xf32>
      %cst_74 = arith.constant 1.000000e+00 : f32
      %141 = vector.broadcast %cst_74 : f32 to vector<8x128xf32>
      %142 = arith.addf %141, %140 : vector<8x128xf32>
      %143 = arith.divf %141, %142 : vector<8x128xf32>
      %144 = vector.extract_strided_slice %137 {offsets = [0, 128], sizes = [8, 128], strides = [1, 1]} : vector<8x512xf32> to vector<8x128xf32>
      %145 = arith.negf %144 : vector<8x128xf32>
      %146 = math.exp %145 : vector<8x128xf32>
      %cst_75 = arith.constant 1.000000e+00 : f32
      %147 = vector.broadcast %cst_75 : f32 to vector<8x128xf32>
      %148 = arith.addf %147, %146 : vector<8x128xf32>
      %149 = arith.divf %147, %148 : vector<8x128xf32>
      %150 = vector.extract_strided_slice %137 {offsets = [0, 256], sizes = [8, 128], strides = [1, 1]} : vector<8x512xf32> to vector<8x128xf32>
      %151 = math.tanh %150 : vector<8x128xf32>
      %152 = vector.extract_strided_slice %137 {offsets = [0, 384], sizes = [8, 128], strides = [1, 1]} : vector<8x512xf32> to vector<8x128xf32>
      %153 = arith.negf %152 : vector<8x128xf32>
      %154 = math.exp %153 : vector<8x128xf32>
      %cst_76 = arith.constant 1.000000e+00 : f32
      %155 = vector.broadcast %cst_76 : f32 to vector<8x128xf32>
      %156 = arith.addf %155, %154 : vector<8x128xf32>
      %157 = arith.divf %155, %156 : vector<8x128xf32>
      %158 = arith.mulf %149, %124 : vector<8x128xf32>
      %159 = arith.mulf %143, %151 : vector<8x128xf32>
      %160 = arith.addf %158, %159 : vector<8x128xf32>
      %161 = math.tanh %160 : vector<8x128xf32>
      %162 = arith.mulf %157, %161 : vector<8x128xf32>
      %163 = arith.index_cast %132 : i32 to index
      %c0_77 = arith.constant 0 : index
      %c0_78 = arith.constant 0 : index
      %164 = vector.load %arg13[%163, %c0_77, %c0_78] : memref<8x8x128xf32, #tpu.memory_space<vmem>>, vector<1x8x128xf32>
      %165 = vector.shape_cast %164 : vector<1x8x128xf32> to vector<8x128xf32>
      %166 = vector.shape_cast %162 : vector<8x128xf32> to vector<1x8x128xf32>
      tpu.vector_store %arg13[%163, %c0_77, %c0_78], %166 {strides = array<i32>} : memref<8x8x128xf32, #tpu.memory_space<vmem>>, vector<1x8x128xf32>,
      %c4_i32_79 = arith.constant 4 : i32
      %167 = arith.muli %arg19, %c4_i32_79 : i32
      %c3_i32 = arith.constant 3 : i32
      %168 = arith.addi %167, %c3_i32 : i32
      %169 = arith.index_cast %168 : i32 to index
      %c0_80 = arith.constant 0 : index
      %c0_81 = arith.constant 0 : index
      %170 = vector.load %arg12[%169, %c0_80, %c0_81] : memref<8x8x512xf32, #tpu.memory_space<vmem>>, vector<1x8x512xf32>
      %171 = vector.shape_cast %170 : vector<1x8x512xf32> to vector<8x512xf32>
      %cst_82 = arith.constant dense<0.000000e+00> : vector<8x512xf32>
      %172 = tpu.matmul %162, %12, %cst_82 {dimension_numbers = #tpu.dot_dimension_numbers<[1], [0], [0], [1], [0, 0, 1, 1], [], []>} : vector<8x128xf32>, vector<128x512xf32>, vector<8x512xf32> -> vector<8x512xf32>
      %173 = arith.addf %171, %172 : vector<8x512xf32>
      %174 = vector.extract_strided_slice %173 {offsets = [0, 0], sizes = [8, 128], strides = [1, 1]} : vector<8x512xf32> to vector<8x128xf32>
      %175 = arith.negf %174 : vector<8x128xf32>
      %176 = math.exp %175 : vector<8x128xf32>
      %cst_83 = arith.constant 1.000000e+00 : f32
      %177 = vector.broadcast %cst_83 : f32 to vector<8x128xf32>
      %178 = arith.addf %177, %176 : vector<8x128xf32>
      %179 = arith.divf %177, %178 : vector<8x128xf32>
      %180 = vector.extract_strided_slice %173 {offsets = [0, 128], sizes = [8, 128], strides = [1, 1]} : vector<8x512xf32> to vector<8x128xf32>
      %181 = arith.negf %180 : vector<8x128xf32>
      %182 = math.exp %181 : vector<8x128xf32>
      %cst_84 = arith.constant 1.000000e+00 : f32
      %183 = vector.broadcast %cst_84 : f32 to vector<8x128xf32>
      %184 = arith.addf %183, %182 : vector<8x128xf32>
      %185 = arith.divf %183, %184 : vector<8x128xf32>
      %186 = vector.extract_strided_slice %173 {offsets = [0, 256], sizes = [8, 128], strides = [1, 1]} : vector<8x512xf32> to vector<8x128xf32>
      %187 = math.tanh %186 : vector<8x128xf32>
      %188 = vector.extract_strided_slice %173 {offsets = [0, 384], sizes = [8, 128], strides = [1, 1]} : vector<8x512xf32> to vector<8x128xf32>
      %189 = arith.negf %188 : vector<8x128xf32>
      %190 = math.exp %189 : vector<8x128xf32>
      %cst_85 = arith.constant 1.000000e+00 : f32
      %191 = vector.broadcast %cst_85 : f32 to vector<8x128xf32>
      %192 = arith.addf %191, %190 : vector<8x128xf32>
      %193 = arith.divf %191, %192 : vector<8x128xf32>
      %194 = arith.mulf %185, %160 : vector<8x128xf32>
      %195 = arith.mulf %179, %187 : vector<8x128xf32>
      %196 = arith.addf %194, %195 : vector<8x128xf32>
      %197 = math.tanh %196 : vector<8x128xf32>
      %198 = arith.mulf %193, %197 : vector<8x128xf32>
      %199 = arith.index_cast %168 : i32 to index
      %c0_86 = arith.constant 0 : index
      %c0_87 = arith.constant 0 : index
      %200 = vector.load %arg13[%199, %c0_86, %c0_87] : memref<8x8x128xf32, #tpu.memory_space<vmem>>, vector<1x8x128xf32>
      %201 = vector.shape_cast %200 : vector<1x8x128xf32> to vector<8x128xf32>
      %202 = vector.shape_cast %198 : vector<8x128xf32> to vector<1x8x128xf32>
      tpu.vector_store %arg13[%199, %c0_86, %c0_87], %202 {strides = array<i32>} : memref<8x8x128xf32, #tpu.memory_space<vmem>>, vector<1x8x128xf32>,
      scf.yield %198, %196 : vector<8x128xf32>, vector<8x128xf32>
    }
    %c2_i32_17 = arith.constant 2 : i32
    %c0_18 = arith.constant 0 : index
    %c0_19 = arith.constant 0 : index
    %17 = vector.load %arg14[%c0_18, %c0_19] : memref<8x128xf32, #tpu.memory_space<vmem>>, vector<8x128xf32>
    tpu.vector_store %arg14[%c0_18, %c0_19], %16#0 {strides = array<i32>} : memref<8x128xf32, #tpu.memory_space<vmem>>, vector<8x128xf32>,
    %c0_20 = arith.constant 0 : index
    %c0_21 = arith.constant 0 : index
    %18 = vector.load %arg15[%c0_20, %c0_21] : memref<8x128xf32, #tpu.memory_space<vmem>>, vector<8x128xf32>
    tpu.vector_store %arg15[%c0_20, %c0_21], %16#1 {strides = array<i32>} : memref<8x128xf32, #tpu.memory_space<vmem>>, vector<8x128xf32>,
    %c0_22 = arith.constant 0 : index
    %c0_23 = arith.constant 0 : index
    %c0_24 = arith.constant 0 : index
    %19 = vector.load %arg13[%c0_22, %c0_23, %c0_24] : memref<8x8x128xf32, #tpu.memory_space<vmem>>, vector<8x8x128xf32>
    %20 = vector.shape_cast %19 : vector<8x8x128xf32> to vector<64x128xf32>
    %c0_25 = arith.constant 0 : index
    %c0_26 = arith.constant 0 : index
    %21 = vector.load %arg6[%c0_25, %c0_26] : memref<128x128xf32, #tpu.memory_space<vmem>>, vector<128x128xf32>
    %cst_27 = arith.constant dense<0.000000e+00> : vector<64x128xf32>
    %22 = tpu.matmul %20, %21, %cst_27 {dimension_numbers = #tpu.dot_dimension_numbers<[1], [0], [0], [1], [0, 0, 1, 1], [], []>} : vector<64x128xf32>, vector<128x128xf32>, vector<64x128xf32> -> vector<64x128xf32>
    %c0_28 = arith.constant 0 : index
    %c0_29 = arith.constant 0 : index
    %23 = vector.load %arg7[%c0_28, %c0_29] : memref<1x128xf32, #tpu.memory_space<vmem>>, vector<1x128xf32>
    %24 = vector.broadcast %23 : vector<1x128xf32> to vector<64x128xf32>
    %25 = arith.addf %22, %24 : vector<64x128xf32>
    %26 = math.tanh %25 : vector<64x128xf32>
    %c0_30 = arith.constant 0 : index
    %c0_31 = arith.constant 0 : index
    %27 = vector.load %arg8[%c0_30, %c0_31] : memref<1x128xf32, #tpu.memory_space<vmem>>, vector<1x128xf32>
    %28 = vector.broadcast %27 : vector<1x128xf32> to vector<64x128xf32>
    %29 = arith.mulf %26, %28 : vector<64x128xf32>
    %cst_32 = arith.constant dense<0.000000e+00> : vector<64xf32>
    %30 = vector.multi_reduction <add>, %29, %cst_32 [1] : vector<64x128xf32> to vector<64xf32>
    %31 = vector.shape_cast %30 : vector<64xf32> to vector<64x1xf32>
    %32 = vector.shape_cast %31 : vector<64x1xf32> to vector<8x8x1xf32>
    %c0_33 = arith.constant 0 : index
    %c0_34 = arith.constant 0 : index
    %33 = vector.load %arg16[%c0_33, %c0_34] : memref<8x1xf32, #tpu.memory_space<vmem>>, vector<8x1xf32>
    %cst_35 = arith.constant dense<0xFF800000> : vector<8x1xf32>
    %34 = vector.multi_reduction <maximumf>, %32, %cst_35 [0] : vector<8x8x1xf32> to vector<8x1xf32>
    %35 = arith.maximumf %33, %34 : vector<8x1xf32>
    %36 = arith.subf %33, %35 : vector<8x1xf32>
    %37 = math.exp %36 : vector<8x1xf32>
    %38 = vector.shape_cast %35 : vector<8x1xf32> to vector<1x8x1xf32>
    %39 = vector.broadcast %38 : vector<1x8x1xf32> to vector<8x8x1xf32>
    %40 = arith.subf %32, %39 : vector<8x8x1xf32>
    %41 = math.exp %40 : vector<8x8x1xf32>
    %c0_36 = arith.constant 0 : index
    %c0_37 = arith.constant 0 : index
    %42 = vector.load %arg17[%c0_36, %c0_37] : memref<8x1xf32, #tpu.memory_space<vmem>>, vector<8x1xf32>
    %43 = arith.mulf %37, %42 : vector<8x1xf32>
    %cst_38 = arith.constant dense<0.000000e+00> : vector<8x1xf32>
    %44 = vector.multi_reduction <add>, %41, %cst_38 [0] : vector<8x8x1xf32> to vector<8x1xf32>
    %45 = arith.addf %43, %44 : vector<8x1xf32>
    %c0_39 = arith.constant 0 : index
    %c0_40 = arith.constant 0 : index
    %46 = vector.load %arg17[%c0_39, %c0_40] : memref<8x1xf32, #tpu.memory_space<vmem>>, vector<8x1xf32>
    tpu.vector_store %arg17[%c0_39, %c0_40], %45 {strides = array<i32>} : memref<8x1xf32, #tpu.memory_space<vmem>>, vector<8x1xf32>,
    %c0_41 = arith.constant 0 : index
    %c0_42 = arith.constant 0 : index
    %47 = vector.load %arg18[%c0_41, %c0_42] : memref<8x128xf32, #tpu.memory_space<vmem>>, vector<8x128xf32>
    %48 = vector.broadcast %37 : vector<8x1xf32> to vector<8x128xf32>
    %49 = arith.mulf %48, %47 : vector<8x128xf32>
    %50 = vector.broadcast %41 : vector<8x8x1xf32> to vector<8x8x128xf32>
    %51 = arith.mulf %50, %19 : vector<8x8x128xf32>
    %cst_43 = arith.constant dense<0.000000e+00> : vector<8x128xf32>
    %52 = vector.multi_reduction <add>, %51, %cst_43 [0] : vector<8x8x128xf32> to vector<8x128xf32>
    %53 = arith.addf %49, %52 : vector<8x128xf32>
    %c0_44 = arith.constant 0 : index
    %c0_45 = arith.constant 0 : index
    %54 = vector.load %arg18[%c0_44, %c0_45] : memref<8x128xf32, #tpu.memory_space<vmem>>, vector<8x128xf32>
    tpu.vector_store %arg18[%c0_44, %c0_45], %53 {strides = array<i32>} : memref<8x128xf32, #tpu.memory_space<vmem>>, vector<8x128xf32>,
    %c0_46 = arith.constant 0 : index
    %c0_47 = arith.constant 0 : index
    %55 = vector.load %arg16[%c0_46, %c0_47] : memref<8x1xf32, #tpu.memory_space<vmem>>, vector<8x1xf32>
    tpu.vector_store %arg16[%c0_46, %c0_47], %35 {strides = array<i32>} : memref<8x1xf32, #tpu.memory_space<vmem>>, vector<8x1xf32>,
    %c0_i32_48 = arith.constant 0 : i32
    %56 = arith.cmpi eq, %arg1, %c0_i32_48 : i32
    %57 = arith.extui %56 : i1 to i32
    %c0_i32_49 = arith.constant 0 : i32
    %58 = arith.cmpi ne, %57, %c0_i32_49 : i32
    scf.if %58 {
      %c0_50 = arith.constant 0 : index
      %c0_51 = arith.constant 0 : index
      %59 = vector.load %arg18[%c0_50, %c0_51] : memref<8x128xf32, #tpu.memory_space<vmem>>, vector<8x128xf32>
      %c0_52 = arith.constant 0 : index
      %c0_53 = arith.constant 0 : index
      %60 = vector.load %arg17[%c0_52, %c0_53] : memref<8x1xf32, #tpu.memory_space<vmem>>, vector<8x1xf32>
      %61 = tpu.reciprocal %60 {approx = true} : vector<8x1xf32> -> vector<8x1xf32>
      %62 = vector.broadcast %61 : vector<8x1xf32> to vector<8x128xf32>
      %63 = arith.mulf %59, %62 : vector<8x128xf32>
      %c0_54 = arith.constant 0 : index
      %c0_55 = arith.constant 0 : index
      %64 = vector.load %arg9[%c0_54, %c0_55] : memref<1x128xf32, #tpu.memory_space<vmem>>, vector<1x128xf32>
      %65 = vector.broadcast %64 : vector<1x128xf32> to vector<8x128xf32>
      %66 = arith.mulf %63, %65 : vector<8x128xf32>
      %cst_56 = arith.constant dense<0.000000e+00> : vector<8xf32>
      %67 = vector.multi_reduction <add>, %66, %cst_56 [1] : vector<8x128xf32> to vector<8xf32>
      %68 = vector.shape_cast %67 : vector<8xf32> to vector<8x1xf32>
      %c0_57 = arith.constant 0 : index
      %c0_58 = arith.constant 0 : index
      %69 = vector.load %arg10[%c0_57, %c0_58] : memref<1x1xf32, #tpu.memory_space<vmem>>, vector<1x1xf32>
      %70 = vector.broadcast %69 : vector<1x1xf32> to vector<8x1xf32>
      %71 = arith.addf %68, %70 : vector<8x1xf32>
      %c0_59 = arith.constant 0 : index
      %c0_60 = arith.constant 0 : index
      %72 = vector.load %arg11[%c0_59, %c0_60] : memref<8x1xf32, #tpu.memory_space<vmem>>, vector<8x1xf32>
      tpu.vector_store %arg11[%c0_59, %c0_60], %71 {strides = array<i32>} : memref<8x1xf32, #tpu.memory_space<vmem>>, vector<8x1xf32>,
    } else {
    }
    return
  }
  func.func @transform_0(%arg0: i32, %arg1: i32) -> (i32, i32, i32) {
    %c0_i32 = arith.constant 0 : i32
    %c0_i32_0 = arith.constant 0 : i32
    return %arg1, %arg0, %c0_i32 : i32, i32, i32
  }
  func.func @transform_1(%arg0: i32, %arg1: i32) -> (i32, i32) {
    %c0_i32 = arith.constant 0 : i32
    %c0_i32_0 = arith.constant 0 : i32
    %c0_i32_1 = arith.constant 0 : i32
    return %c0_i32, %c0_i32_0 : i32, i32
  }
  func.func @transform_2(%arg0: i32, %arg1: i32) -> (i32, i32) {
    %c0_i32 = arith.constant 0 : i32
    %c0_i32_0 = arith.constant 0 : i32
    %c0_i32_1 = arith.constant 0 : i32
    return %c0_i32, %c0_i32_0 : i32, i32
  }
  func.func @transform_3(%arg0: i32, %arg1: i32) -> (i32, i32) {
    %c0_i32 = arith.constant 0 : i32
    %c0_i32_0 = arith.constant 0 : i32
    %c0_i32_1 = arith.constant 0 : i32
    return %c0_i32, %c0_i32_0 : i32, i32
  }
  func.func @transform_4(%arg0: i32, %arg1: i32) -> (i32, i32) {
    %c0_i32 = arith.constant 0 : i32
    %c0_i32_0 = arith.constant 0 : i32
    %c0_i32_1 = arith.constant 0 : i32
    return %c0_i32, %c0_i32_0 : i32, i32
  }
  func.func @transform_5(%arg0: i32, %arg1: i32) -> (i32, i32) {
    %c0_i32 = arith.constant 0 : i32
    %c0_i32_0 = arith.constant 0 : i32
    %c0_i32_1 = arith.constant 0 : i32
    return %c0_i32, %c0_i32_0 : i32, i32
  }
  func.func @transform_6(%arg0: i32, %arg1: i32) -> (i32, i32) {
    %c0_i32 = arith.constant 0 : i32
    %c0_i32_0 = arith.constant 0 : i32
    %c0_i32_1 = arith.constant 0 : i32
    return %c0_i32, %c0_i32_0 : i32, i32
  }
  func.func @transform_7(%arg0: i32, %arg1: i32) -> (i32, i32) {
    %c0_i32 = arith.constant 0 : i32
    %c0_i32_0 = arith.constant 0 : i32
    %c0_i32_1 = arith.constant 0 : i32
    return %c0_i32, %c0_i32_0 : i32, i32
  }
  func.func @transform_8(%arg0: i32, %arg1: i32) -> (i32, i32) {
    %c0_i32 = arith.constant 0 : i32
    %c0_i32_0 = arith.constant 0 : i32
    %c0_i32_1 = arith.constant 0 : i32
    return %c0_i32, %c0_i32_0 : i32, i32
  }
  func.func @transform_9(%arg0: i32, %arg1: i32) -> (i32, i32) {
    %c0_i32 = arith.constant 0 : i32
    %c0_i32_0 = arith.constant 0 : i32
    return %arg0, %c0_i32 : i32, i32
  }
}

</mosaic_0001>

<llo_original>
// kernel: tpu_custom_call.1
$region0: #{tpu_custom_call.1}
  #allocation0 [shape = 'u32[]', space=smem, size = 0x4, offset = 0x4, fixed_abs, tag = 'smem constant byte address 0x4 - core index']
  #allocation1 [shape = 'u32[144,128]{1,0:T(1,128)}', space=vmem, size = 0x12000, scoped, tag = 'internal scratch']
  #allocation2 [shape = 'f32[8,8,512]{2,1,0:T(8,128)}', space=vmem, size = 0x20000, scoped, tag = 'scratch operand']
  #allocation3 [shape = 'f32[8,8,128]{2,1,0:T(8,128)}', space=vmem, size = 0x8000, scoped, tag = 'scratch operand']
  #allocation4 [shape = 'f32[8,128]{1,0:T(8,128)}', space=vmem, size = 0x1000, scoped, tag = 'scratch operand']
  #allocation5 [shape = 'f32[8,128]{1,0:T(8,128)}', space=vmem, size = 0x1000, scoped, tag = 'scratch operand']
  #allocation6 [shape = 'f32[8,1]{1,0:T(8,128)}', space=vmem, size = 0x1000, scoped, tag = 'scratch operand']
  #allocation7 [shape = 'f32[8,1]{1,0:T(8,128)}', space=vmem, size = 0x1000, scoped, tag = 'scratch operand']
  #allocation8 [shape = 'f32[8,128]{1,0:T(8,128)}', space=vmem, size = 0x1000, scoped, tag = 'scratch operand']
  #allocation9 [shape = 'f32[1,1]{1,0:T(1,128)S(1)}', space=vmem, size = 0x200, scoped, tag = 'scoped memory for tpu_custom_call.1']
  %s0 = inlined_call_operand.vmem [shape: f32[8,8,4], index: 0, kind: input, shape index: {}]
  %s1 = inlined_call_operand.vmem [shape: f32[4,512], index: 1, kind: input, shape index: {}]
  %s2 = inlined_call_operand.hbm [shape: f32[128,512], index: 2, kind: input, shape index: {}]
  %s3 = inlined_call_operand.vmem [shape: f32[1,512], index: 3, kind: input, shape index: {}]
  %s4 = inlined_call_operand.hbm [shape: f32[128,128], index: 4, kind: input, shape index: {}]
  %s5 = inlined_call_operand.vmem [shape: f32[1,128], index: 5, kind: input, shape index: {}]
  %s6 = inlined_call_operand.vmem [shape: f32[1,128], index: 6, kind: input, shape index: {}]
  %s7 = inlined_call_operand.vmem [shape: f32[1,128], index: 7, kind: input, shape index: {}]
  %s8 = inlined_call_operand.<no memory space> [shape: f32[1,1], index: 8, kind: input, shape index: {}]
  %s9 = inlined_call_operand.vmem [shape: f32[8,1], index: 9, kind: output, shape index: {}]
  %s10 = sld [smem:[#allocation0]]
  $region69: #{tpu_custom_call.1} parent=0
    _
  %s12 = ssub.s32 1, %s10
  %s13 = scalar_select 0, %s12, %s10
  %v14 = vstv %s8
  %15 = vst [vmem:[#allocation9] sm:$0x1] %v14
  $region1: #{tpu_custom_call.1} parent=0
    #allocation10 [shape = 'u8[262144]{0}', space=vmem, size = 0x40000, scoped, tag = 'input window, operand 2, single buffered']
    #allocation11 [shape = 's32[1]{0}', space=sflag, size = 0x4, scoped, tag = 'scoped memory for tpu_custom_call.1']
    #allocation12 [shape = 'u8[65536]{0}', space=vmem, size = 0x10000, scoped, tag = 'input window, operand 4, single buffered']
    #allocation13 [shape = 's32[1]{0}', space=sflag, size = 0x4, scoped, tag = 'scoped memory for tpu_custom_call.1']
    %16 = vsyncpa [#allocation11], 0
    %17 = vsyncpa [#allocation13], 0
    // Predicated region
    $region2: #{tpu_custom_call.1} parent=1 // pred_check
      _
    $region3: #{tpu_custom_call.1} parent=1 // pred_check_branch
      %19 = sbr.rel (0) target = $region5
    $region4: #{tpu_custom_call.1} parent=1 // pred_region
      _
    $region5: #{tpu_custom_call.1} parent=1 // pred_fallthru
      _
    // Predicated region
    $region6: #{tpu_custom_call.1} parent=1 // pred_check
      _
    $region7: #{tpu_custom_call.1} parent=1 // pred_check_branch
      %21 = sbr.rel (0) target = $region9
    $region8: #{tpu_custom_call.1} parent=1 // pred_region
      _
    $region9: #{tpu_custom_call.1} parent=1 // pred_fallthru
      _
    // Predicated region
    $region10: #{tpu_custom_call.1} parent=1 // pred_check
      _
    $region11: #{tpu_custom_call.1} parent=1 // pred_check_branch
      %23 = sbr.rel (0) target = $region13
    $region12: #{tpu_custom_call.1} parent=1 // pred_region
      %s25 = ssub.s32 8192, 8192
      %26 = vsyncadd [#allocation11], %s25
      %s27 = sshll.u32 [#allocation10], 4
      %s28 = int_to_ptr.vmem [resolvable:$true] %s27
      %33 = dma.hbm_to_vmem [thread:$0]  %s2, 8192, %s28, [#allocation11], 512, 512, 32
    $region13: #{tpu_custom_call.1} parent=1 // pred_fallthru
      _
    // Predicated region
    $region14: #{tpu_custom_call.1} parent=1 // pred_check
      _
    $region15: #{tpu_custom_call.1} parent=1 // pred_check_branch
      %35 = sbr.rel (0) target = $region17
    $region16: #{tpu_custom_call.1} parent=1 // pred_region
      _
    $region17: #{tpu_custom_call.1} parent=1 // pred_fallthru
      _
    // Predicated region
    $region18: #{tpu_custom_call.1} parent=1 // pred_check
      _
    $region19: #{tpu_custom_call.1} parent=1 // pred_check_branch
      %37 = sbr.rel (0) target = $region21
    $region20: #{tpu_custom_call.1} parent=1 // pred_region
      %s39 = ssub.s32 2048, 2048
      %40 = vsyncadd [#allocation13], %s39
      %s41 = sshll.u32 [#allocation12], 4
      %s42 = int_to_ptr.vmem [resolvable:$true] %s41
      %47 = dma.hbm_to_vmem [thread:$0]  %s4, 2048, %s42, [#allocation13], 128, 128, 8
    $region21: #{tpu_custom_call.1} parent=1 // pred_fallthru
      _
    // Predicated region
    $region22: #{tpu_custom_call.1} parent=1 // pred_check
      _
    $region23: #{tpu_custom_call.1} parent=1 // pred_check_branch
      %49 = sbr.rel (0) target = $region25
    $region24: #{tpu_custom_call.1} parent=1 // pred_region
      _
    $region25: #{tpu_custom_call.1} parent=1 // pred_fallthru
      _
    // Predicated region
    $region26: #{tpu_custom_call.1} parent=1 // pred_check
      _
    $region27: #{tpu_custom_call.1} parent=1 // pred_check_branch
      %51 = sbr.rel (0) target = $region29
    $region28: #{tpu_custom_call.1} parent=1 // pred_region
      _
    $region29: #{tpu_custom_call.1} parent=1 // pred_fallthru
      _
    // Predicated region
    $region30: #{tpu_custom_call.1} parent=1 // pred_check
      _
    $region31: #{tpu_custom_call.1} parent=1 // pred_check_branch
      %53 = sbr.rel (0) target = $region33
    $region32: #{tpu_custom_call.1} parent=1 // pred_region
      _
    $region33: #{tpu_custom_call.1} parent=1 // pred_fallthru
      _
    // Predicated region
    $region34: #{tpu_custom_call.1} parent=1 // pred_check
      _
    $region35: #{tpu_custom_call.1} parent=1 // pred_check_branch
      %55 = sbr.rel (0) target = $region37
    $region36: #{tpu_custom_call.1} parent=1 // pred_region
      _
    $region37: #{tpu_custom_call.1} parent=1 // pred_fallthru
      _
    // Predicated region
    $region38: #{tpu_custom_call.1} parent=1 // pred_check
      _
    $region39: #{tpu_custom_call.1} parent=1 // pred_check_branch
      %57 = sbr.rel (0) target = $region41
    $region40: #{tpu_custom_call.1} parent=1 // pred_region
      %58 = dma.done [#allocation11], 8192
    $region41: #{tpu_custom_call.1} parent=1 // pred_fallthru
      _
    // Predicated region
    $region42: #{tpu_custom_call.1} parent=1 // pred_check
      _
    $region43: #{tpu_custom_call.1} parent=1 // pred_check_branch
      %60 = sbr.rel (0) target = $region45
    $region44: #{tpu_custom_call.1} parent=1 // pred_region
      %61 = dma.done [#allocation13], 2048
    $region45: #{tpu_custom_call.1} parent=1 // pred_fallthru
      _
    %p62 = scmp.eq.s32.totalorder 0, 0
    // Predicated region
    $region46: #{tpu_custom_call.1} parent=1 // pred_check
      %p63 = pneg %p62
    $region47: #{tpu_custom_call.1} parent=1 // pred_check_branch
      %65 = sbr.rel (%p63) target = $region49
    $region48: #{tpu_custom_call.1} parent=1 // pred_region
      %66 = vst [vmem:[#allocation4] sm:$0xff] 0.0
      %67 = vst [vmem:[#allocation5] sm:$0xff] 0.0
      %68 = vst [vmem:[#allocation8] sm:$0xff] 0.0
      %vm69 = vcmask 7168
      %70 = vst.msk [vmem:[#allocation7] sm:$0xff] %vm69, 0.0
      %71 = vst.msk [vmem:[#allocation6] sm:$0xff] %vm69, -inf
    $region49: #{tpu_custom_call.1} parent=1 // pred_fallthru
      _
    %v72 = vld [vmem:[%s0] sm:$0xff]
    %v73 = vld [vmem:[%s0 + $0x8] sm:$0xff]
    %v74 = vld [vmem:[%s0 + $0x10] sm:$0xff]
    %v75 = vld [vmem:[%s0 + $0x18] sm:$0xff]
    %v76 = vld [vmem:[%s0 + $0x20] sm:$0xff]
    %v77 = vld [vmem:[%s0 + $0x28] sm:$0xff]
    %v78 = vld [vmem:[%s0 + $0x30] sm:$0xff]
    %v79 = vld [vmem:[%s0 + $0x38] sm:$0xff]
    %v80 = vld [vmem:[%s1] sm:$0xff]
    %v81 = vld [vmem:[%s1 + $0x8] sm:$0xff]
    %v82 = vld [vmem:[%s3] sm:$0xf]
    %v84 = vlaneseq
    %v85 = vshrl.u32 %v84, 7
    %v86 = vsub.s32 0, %v85
    %v87 = vrot.slane %v82, %v86
    %v88 = vlaneseq
    %v89 = vshrl.u32 %v88, 7
    %v90 = vsub.s32 1, %v89
    %v91 = vrot.slane %v82, %v90
    %v92 = vlaneseq
    %v93 = vshrl.u32 %v92, 7
    %v94 = vsub.s32 2, %v93
    %v95 = vrot.slane %v82, %v94
    %v96 = vlaneseq
    %v97 = vshrl.u32 %v96, 7
    %v98 = vsub.s32 3, %v97
    %v99 = vrot.slane %v82, %v98
    %v106 = vcombine.high %v80, %v80
    %v107 = vcombine.high %v81, %v81
    %vm108 = vcmask 31744
    %v110 = vsel %vm108, %v72, 0
    %v113 = vsel %vm108, %v73, 0
    %v116 = vsel %vm108, %v74, 0
    %v119 = vsel %vm108, %v75, 0
    %v122 = vsel %vm108, %v76, 0
    %v125 = vsel %vm108, %v77, 0
    %v128 = vsel %vm108, %v78, 0
    %v131 = vsel %vm108, %v79, 0
    %vm133 = vcmask 1043456
    %v134 = vsel %vm133, %v80, 0
    %v136 = vsel %vm133, %v106, 0
    %v138 = vsel %vm133, %v81, 0
    %v140 = vsel %vm133, %v107, 0
    %142 = vmatprep.subr.mxu0 0.0
    %143 = vmatpush1.msra.mxu0 0.0
    %144 = vmatprep.subr.mxu0 0.0
    %145 = vmatpush1.msra.mxu0 0.0
    %146 = vmatprep.subr.mxu0 0.0
    %147 = vmatpush1.msra.mxu0 0.0
    %148 = vmatprep.subr.mxu0 0.0
    %149 = vmatpush1.msra.mxu0 0.0
    %150 = vmatprep.subr.mxu0 0.0
    %151 = vmatpush1.msra.mxu0 0.0
    %152 = vmatprep.subr.mxu0 0.0
    %153 = vmatpush1.msra.mxu0 0.0
    %154 = vmatprep.subr.mxu0 0.0
    %155 = vmatpush1.msra.mxu0 0.0
    %156 = vmatprep.subr.mxu0 0.0
    %157 = vmatpush1.msra.mxu0 0.0
    %158 = vmatprep.subr.mxu0 0.0
    %159 = vmatpush1.msra.mxu0 0.0
    %160 = vmatprep.subr.mxu0 0.0
    %161 = vmatpush1.msra.mxu0 0.0
    %162 = vmatprep.subr.mxu0 0.0
    %163 = vmatpush1.msra.mxu0 0.0
    %164 = vmatprep.subr.mxu0 0.0
    %165 = vmatpush1.msra.mxu0 0.0
    %166 = vmatprep.subr.mxu0 0.0
    %167 = vmatpush1.msra.mxu0 0.0
    %168 = vmatprep.subr.mxu0 0.0
    %169 = vmatpush1.msra.mxu0 0.0
    %170 = vmatprep.subr.mxu0 0.0
    %171 = vmatpush1.msra.mxu0 0.0
    %172 = vmatprep.subr.mxu0 %v136
    %173 = vmatpush1.msra.mxu0 %v134
    %174 = vmatprep.subr.mxu0 0.0
    %175 = vmatpush2.msra.mxu0 0.0
    %176 = vmatprep.subr.mxu0 0.0
    %177 = vmatpush2.msra.mxu0 0.0
    %178 = vmatprep.subr.mxu0 0.0
    %179 = vmatpush2.msra.mxu0 0.0
    %180 = vmatprep.subr.mxu0 0.0
    %181 = vmatpush2.msra.mxu0 0.0
    %182 = vmatprep.subr.mxu0 0.0
    %183 = vmatpush2.msra.mxu0 0.0
    %184 = vmatprep.subr.mxu0 0.0
    %185 = vmatpush2.msra.mxu0 0.0
    %186 = vmatprep.subr.mxu0 0.0
    %187 = vmatpush2.msra.mxu0 0.0
    %188 = vmatprep.subr.mxu0 0.0
    %189 = vmatpush2.msra.mxu0 0.0
    %190 = vmatprep.subr.mxu0 0.0
    %191 = vmatpush2.msra.mxu0 0.0
    %192 = vmatprep.subr.mxu0 0.0
    %193 = vmatpush2.msra.mxu0 0.0
    %194 = vmatprep.subr.mxu0 0.0
    %195 = vmatpush2.msra.mxu0 0.0
    %196 = vmatprep.subr.mxu0 0.0
    %197 = vmatpush2.msra.mxu0 0.0
    %198 = vmatprep.subr.mxu0 0.0
    %199 = vmatpush2.msra.mxu0 0.0
    %200 = vmatprep.subr.mxu0 0.0
    %201 = vmatpush2.msra.mxu0 0.0
    %202 = vmatprep.subr.mxu0 0.0
    %203 = vmatpush2.msra.mxu0 0.0
    %204 = vmatprep.subr.mxu0 0.0
    %205 = vmatpush2.msra.mxu0 0.0
    %206 = vmatprep.mubr.f32.mxu0 0.0
    %207 = vmatmul.mubr.f32.gmra.mxu0 %v110
    %v208 = vpop.f32.mrf.mxu0
    %v209 = vadd.f32 %v87, %v208
    %v210 = vpop.f32.mrf.mxu0
    %v211 = vadd.f32 %v91, %v210
    %212 = vmatprep.mubr.f32.mxu0 0.0
    %213 = vmatmul.mubr.f32.gmra.mxu0 %v113
    %v214 = vpop.f32.mrf.mxu0
    %v215 = vadd.f32 %v87, %v214
    %v216 = vpop.f32.mrf.mxu0
    %v217 = vadd.f32 %v91, %v216
    %218 = vmatprep.mubr.f32.mxu0 0.0
    %219 = vmatmul.mubr.f32.gmra.mxu0 %v116
    %v220 = vpop.f32.mrf.mxu0
    %v221 = vadd.f32 %v87, %v220
    %v222 = vpop.f32.mrf.mxu0
    %v223 = vadd.f32 %v91, %v222
    %224 = vmatprep.mubr.f32.mxu0 0.0
    %225 = vmatmul.mubr.f32.gmra.mxu0 %v119
    %v226 = vpop.f32.mrf.mxu0
    %v227 = vadd.f32 %v87, %v226
    %v228 = vpop.f32.mrf.mxu0
    %v229 = vadd.f32 %v91, %v228
    %230 = vmatprep.mubr.f32.mxu0 0.0
    %231 = vmatmul.mubr.f32.gmra.mxu0 %v122
    %v232 = vpop.f32.mrf.mxu0
    %v233 = vadd.f32 %v87, %v232
    %v234 = vpop.f32.mrf.mxu0
    %v235 = vadd.f32 %v91, %v234
    %236 = vmatprep.mubr.f32.mxu0 0.0
    %237 = vmatmul.mubr.f32.gmra.mxu0 %v125
    %v238 = vpop.f32.mrf.mxu0
    %v239 = vadd.f32 %v87, %v238
    %v240 = vpop.f32.mrf.mxu0
    %v241 = vadd.f32 %v91, %v240
    %242 = vmatprep.mubr.f32.mxu0 0.0
    %243 = vmatmul.mubr.f32.gmra.mxu0 %v128
    %v244 = vpop.f32.mrf.mxu0
    %v245 = vadd.f32 %v87, %v244
    %v246 = vpop.f32.mrf.mxu0
    %v247 = vadd.f32 %v91, %v246
    %248 = vmatprep.mubr.f32.mxu0 0.0
    %249 = vmatmul.mubr.f32.gmra.mxu0 %v131
    %v250 = vpop.f32.mrf.mxu0
    %v251 = vadd.f32 %v87, %v250
    %v252 = vpop.f32.mrf.mxu0
    %v253 = vadd.f32 %v91, %v252
    %254 = vdwg.mxu0
    %255 = vmatprep.subr.mxu0 0.0
    %256 = vmatpush1.msra.mxu0 0.0
    %257 = vmatprep.subr.mxu0 0.0
    %258 = vmatpush1.msra.mxu0 0.0
    %259 = vmatprep.subr.mxu0 0.0
    %260 = vmatpush1.msra.mxu0 0.0
    %261 = vmatprep.subr.mxu0 0.0
    %262 = vmatpush1.msra.mxu0 0.0
    %263 = vmatprep.subr.mxu0 0.0
    %264 = vmatpush1.msra.mxu0 0.0
    %265 = vmatprep.subr.mxu0 0.0
    %266 = vmatpush1.msra.mxu0 0.0
    %267 = vmatprep.subr.mxu0 0.0
    %268 = vmatpush1.msra.mxu0 0.0
    %269 = vmatprep.subr.mxu0 0.0
    %270 = vmatpush1.msra.mxu0 0.0
    %271 = vmatprep.subr.mxu0 0.0
    %272 = vmatpush1.msra.mxu0 0.0
    %273 = vmatprep.subr.mxu0 0.0
    %274 = vmatpush1.msra.mxu0 0.0
    %275 = vmatprep.subr.mxu0 0.0
    %276 = vmatpush1.msra.mxu0 0.0
    %277 = vmatprep.subr.mxu0 0.0
    %278 = vmatpush1.msra.mxu0 0.0
    %279 = vmatprep.subr.mxu0 0.0
    %280 = vmatpush1.msra.mxu0 0.0
    %281 = vmatprep.subr.mxu0 0.0
    %282 = vmatpush1.msra.mxu0 0.0
    %283 = vmatprep.subr.mxu0 0.0
    %284 = vmatpush1.msra.mxu0 0.0
    %285 = vmatprep.subr.mxu0 %v140
    %286 = vmatpush1.msra.mxu0 %v138
    %287 = vmatprep.subr.mxu0 0.0
    %288 = vmatpush2.msra.mxu0 0.0
    %289 = vmatprep.subr.mxu0 0.0
    %290 = vmatpush2.msra.mxu0 0.0
    %291 = vmatprep.subr.mxu0 0.0
    %292 = vmatpush2.msra.mxu0 0.0
    %293 = vmatprep.subr.mxu0 0.0
    %294 = vmatpush2.msra.mxu0 0.0
    %295 = vmatprep.subr.mxu0 0.0
    %296 = vmatpush2.msra.mxu0 0.0
    %297 = vmatprep.subr.mxu0 0.0
    %298 = vmatpush2.msra.mxu0 0.0
    %299 = vmatprep.subr.mxu0 0.0
    %300 = vmatpush2.msra.mxu0 0.0
    %301 = vmatprep.subr.mxu0 0.0
    %302 = vmatpush2.msra.mxu0 0.0
    %303 = vmatprep.subr.mxu0 0.0
    %304 = vmatpush2.msra.mxu0 0.0
    %305 = vmatprep.subr.mxu0 0.0
    %306 = vmatpush2.msra.mxu0 0.0
    %307 = vmatprep.subr.mxu0 0.0
    %308 = vmatpush2.msra.mxu0 0.0
    %309 = vmatprep.subr.mxu0 0.0
    %310 = vmatpush2.msra.mxu0 0.0
    %311 = vmatprep.subr.mxu0 0.0
    %312 = vmatpush2.msra.mxu0 0.0
    %313 = vmatprep.subr.mxu0 0.0
    %314 = vmatpush2.msra.mxu0 0.0
    %315 = vmatprep.subr.mxu0 0.0
    %316 = vmatpush2.msra.mxu0 0.0
    %317 = vmatprep.subr.mxu0 0.0
    %318 = vmatpush2.msra.mxu0 0.0
    %319 = vmatprep.mubr.f32.mxu0 0.0
    %320 = vmatmul.mubr.f32.gmra.mxu0 %v110
    %v321 = vpop.f32.mrf.mxu0
    %v322 = vadd.f32 %v95, %v321
    %v323 = vpop.f32.mrf.mxu0
    %v324 = vadd.f32 %v99, %v323
    %325 = vmatprep.mubr.f32.mxu0 0.0
    %326 = vmatmul.mubr.f32.gmra.mxu0 %v113
    %v327 = vpop.f32.mrf.mxu0
    %v328 = vadd.f32 %v95, %v327
    %v329 = vpop.f32.mrf.mxu0
    %v330 = vadd.f32 %v99, %v329
    %331 = vmatprep.mubr.f32.mxu0 0.0
    %332 = vmatmul.mubr.f32.gmra.mxu0 %v116
    %v333 = vpop.f32.mrf.mxu0
    %v334 = vadd.f32 %v95, %v333
    %v335 = vpop.f32.mrf.mxu0
    %v336 = vadd.f32 %v99, %v335
    %337 = vmatprep.mubr.f32.mxu0 0.0
    %338 = vmatmul.mubr.f32.gmra.mxu0 %v119
    %v339 = vpop.f32.mrf.mxu0
    %v340 = vadd.f32 %v95, %v339
    %v341 = vpop.f32.mrf.mxu0
    %v342 = vadd.f32 %v99, %v341
    %343 = vmatprep.mubr.f32.mxu0 0.0
    %344 = vmatmul.mubr.f32.gmra.mxu0 %v122
    %v345 = vpop.f32.mrf.mxu0
    %v346 = vadd.f32 %v95, %v345
    %v347 = vpop.f32.mrf.mxu0
    %v348 = vadd.f32 %v99, %v347
    %349 = vmatprep.mubr.f32.mxu0 0.0
    %350 = vmatmul.mubr.f32.gmra.mxu0 %v125
    %v351 = vpop.f32.mrf.mxu0
    %v352 = vadd.f32 %v95, %v351
    %v353 = vpop.f32.mrf.mxu0
    %v354 = vadd.f32 %v99, %v353
    %355 = vmatprep.mubr.f32.mxu0 0.0
    %356 = vmatmul.mubr.f32.gmra.mxu0 %v128
    %v357 = vpop.f32.mrf.mxu0
    %v358 = vadd.f32 %v95, %v357
    %v359 = vpop.f32.mrf.mxu0
    %v360 = vadd.f32 %v99, %v359
    %361 = vmatprep.mubr.f32.mxu0 0.0
    %362 = vmatmul.mubr.f32.gmra.mxu0 %v131
    %v363 = vpop.f32.mrf.mxu0
    %v364 = vadd.f32 %v95, %v363
    %v365 = vpop.f32.mrf.mxu0
    %v366 = vadd.f32 %v99, %v365
    %367 = vdwg.mxu0
    %368 = vst [vmem:[#allocation2] sm:$0xff] %v209
    %369 = vst [vmem:[#allocation2 + $0x8] sm:$0xff] %v211
    %370 = vst [vmem:[#allocation2 + $0x10] sm:$0xff] %v322
    %371 = vst [vmem:[#allocation2 + $0x18] sm:$0xff] %v324
    %372 = vst [vmem:[#allocation2 + $0x20] sm:$0xff] %v215
    %373 = vst [vmem:[#allocation2 + $0x28] sm:$0xff] %v217
    %374 = vst [vmem:[#allocation2 + $0x30] sm:$0xff] %v328
    %375 = vst [vmem:[#allocation2 + $0x38] sm:$0xff] %v330
    %376 = vst [vmem:[#allocation2 + $0x40] sm:$0xff] %v221
    %377 = vst [vmem:[#allocation2 + $0x48] sm:$0xff] %v223
    %378 = vst [vmem:[#allocation2 + $0x50] sm:$0xff] %v334
    %379 = vst [vmem:[#allocation2 + $0x58] sm:$0xff] %v336
    %380 = vst [vmem:[#allocation2 + $0x60] sm:$0xff] %v227
    %381 = vst [vmem:[#allocation2 + $0x68] sm:$0xff] %v229
    %382 = vst [vmem:[#allocation2 + $0x70] sm:$0xff] %v340
    %383 = vst [vmem:[#allocation2 + $0x78] sm:$0xff] %v342
    %384 = vst [vmem:[#allocation2 + $0x80] sm:$0xff] %v233
    %385 = vst [vmem:[#allocation2 + $0x88] sm:$0xff] %v235
    %386 = vst [vmem:[#allocation2 + $0x90] sm:$0xff] %v346
    %387 = vst [vmem:[#allocation2 + $0x98] sm:$0xff] %v348
    %388 = vst [vmem:[#allocation2 + $0xa0] sm:$0xff] %v239
    %389 = vst [vmem:[#allocation2 + $0xa8] sm:$0xff] %v241
    %390 = vst [vmem:[#allocation2 + $0xb0] sm:$0xff] %v352
    %391 = vst [vmem:[#allocation2 + $0xb8] sm:$0xff] %v354
    %392 = vst [vmem:[#allocation2 + $0xc0] sm:$0xff] %v245
    %393 = vst [vmem:[#allocation2 + $0xc8] sm:$0xff] %v247
    %394 = vst [vmem:[#allocation2 + $0xd0] sm:$0xff] %v358
    %395 = vst [vmem:[#allocation2 + $0xd8] sm:$0xff] %v360
    %396 = vst [vmem:[#allocation2 + $0xe0] sm:$0xff] %v251
    %397 = vst [vmem:[#allocation2 + $0xe8] sm:$0xff] %v253
    %398 = vst [vmem:[#allocation2 + $0xf0] sm:$0xff] %v364
    %399 = vst [vmem:[#allocation2 + $0xf8] sm:$0xff] %v366
    %v400 = vld [vmem:[#allocation10] sm:$0xff]
    %v401 = vld [vmem:[#allocation10 + $0x8] sm:$0xff]
    %v402 = vld [vmem:[#allocation10 + $0x10] sm:$0xff]
    %v403 = vld [vmem:[#allocation10 + $0x18] sm:$0xff]
    %v404 = vld [vmem:[#allocation10 + $0x20] sm:$0xff]
    %v405 = vld [vmem:[#allocation10 + $0x28] sm:$0xff]
    %v406 = vld [vmem:[#allocation10 + $0x30] sm:$0xff]
    %v407 = vld [vmem:[#allocation10 + $0x38] sm:$0xff]
    %v408 = vld [vmem:[#allocation10 + $0x40] sm:$0xff]
    %v409 = vld [vmem:[#allocation10 + $0x48] sm:$0xff]
    %v410 = vld [vmem:[#allocation10 + $0x50] sm:$0xff]
    %v411 = vld [vmem:[#allocation10 + $0x58] sm:$0xff]
    %v412 = vld [vmem:[#allocation10 + $0x60] sm:$0xff]
    %v413 = vld [vmem:[#allocation10 + $0x68] sm:$0xff]
    %v414 = vld [vmem:[#allocation10 + $0x70] sm:$0xff]
    %v415 = vld [vmem:[#allocation10 + $0x78] sm:$0xff]
    %v416 = vld [vmem:[#allocation10 + $0x80] sm:$0xff]
    %v417 = vld [vmem:[#allocation10 + $0x88] sm:$0xff]
    %v418 = vld [vmem:[#allocation10 + $0x90] sm:$0xff]
    %v419 = vld [vmem:[#allocation10 + $0x98] sm:$0xff]
    %v420 = vld [vmem:[#allocation10 + $0xa0] sm:$0xff]
    %v421 = vld [vmem:[#allocation10 + $0xa8] sm:$0xff]
    %v422 = vld [vmem:[#allocation10 + $0xb0] sm:$0xff]
    %v423 = vld [vmem:[#allocation10 + $0xb8] sm:$0xff]
    %v424 = vld [vmem:[#allocation10 + $0xc0] sm:$0xff]
    %v425 = vld [vmem:[#allocation10 + $0xc8] sm:$0xff]
    %v426 = vld [vmem:[#allocation10 + $0xd0] sm:$0xff]
    %v427 = vld [vmem:[#allocation10 + $0xd8] sm:$0xff]
    %v428 = vld [vmem:[#allocation10 + $0xe0] sm:$0xff]
    %v429 = vld [vmem:[#allocation10 + $0xe8] sm:$0xff]
    %v430 = vld [vmem:[#allocation10 + $0xf0] sm:$0xff]
    %v431 = vld [vmem:[#allocation10 + $0xf8] sm:$0xff]
    %v432 = vld [vmem:[#allocation10 + $0x100] sm:$0xff]
    %v433 = vld [vmem:[#allocation10 + $0x108] sm:$0xff]
    %v434 = vld [vmem:[#allocation10 + $0x110] sm:$0xff]
    %v435 = vld [vmem:[#allocation10 + $0x118] sm:$0xff]
    %v436 = vld [vmem:[#allocation10 + $0x120] sm:$0xff]
    %v437 = vld [vmem:[#allocation10 + $0x128] sm:$0xff]
    %v438 = vld [vmem:[#allocation10 + $0x130] sm:$0xff]
    %v439 = vld [vmem:[#allocation10 + $0x138] sm:$0xff]
    %v440 = vld [vmem:[#allocation10 + $0x140] sm:$0xff]
    %v441 = vld [vmem:[#allocation10 + $0x148] sm:$0xff]
    %v442 = vld [vmem:[#allocation10 + $0x150] sm:$0xff]
    %v443 = vld [vmem:[#allocation10 + $0x158] sm:$0xff]
    %v444 = vld [vmem:[#allocation10 + $0x160] sm:$0xff]
    %v445 = vld [vmem:[#allocation10 + $0x168] sm:$0xff]
    %v446 = vld [vmem:[#allocation10 + $0x170] sm:$0xff]
    %v447 = vld [vmem:[#allocation10 + $0x178] sm:$0xff]
    %v448 = vld [vmem:[#allocation10 + $0x180] sm:$0xff]
    %v449 = vld [vmem:[#allocation10 + $0x188] sm:$0xff]
    %v450 = vld [vmem:[#allocation10 + $0x190] sm:$0xff]
    %v451 = vld [vmem:[#allocation10 + $0x198] sm:$0xff]
    %v452 = vld [vmem:[#allocation10 + $0x1a0] sm:$0xff]
    %v453 = vld [vmem:[#allocation10 + $0x1a8] sm:$0xff]
    %v454 = vld [vmem:[#allocation10 + $0x1b0] sm:$0xff]
    %v455 = vld [vmem:[#allocation10 + $0x1b8] sm:$0xff]
    %v456 = vld [vmem:[#allocation10 + $0x1c0] sm:$0xff]
    %v457 = vld [vmem:[#allocation10 + $0x1c8] sm:$0xff]
    %v458 = vld [vmem:[#allocation10 + $0x1d0] sm:$0xff]
    %v459 = vld [vmem:[#allocation10 + $0x1d8] sm:$0xff]
    %v460 = vld [vmem:[#allocation10 + $0x1e0] sm:$0xff]
    %v461 = vld [vmem:[#allocation10 + $0x1e8] sm:$0xff]
    %v462 = vld [vmem:[#allocation10 + $0x1f0] sm:$0xff]
    %v463 = vld [vmem:[#allocation10 + $0x1f8] sm:$0xff]
    %v464 = vld [vmem:[#allocation4] sm:$0xff]
    %v465 = vld [vmem:[#allocation5] sm:$0xff]
    loop: start=0, step=1, limit=2
    $region50: #{tpu_custom_call.1} parent=1 // loop_pre_header
      _
    $region51: #{tpu_custom_call.1} parent=1 // loop_header
      %s467 = sphi 0, %s471
      %p468 = scmp.ge.s32.totalorder %s467, 2
      %v472 = vphi %v464, %v1194
      %v473 = vphi %v465, %v1192
    $region52: #{tpu_custom_call.1} parent=1 // loop_header_branch
      %470 = sbr.rel (%p468) target = $region56
    $region53: #{tpu_custom_call.1} parent=1 // loop_body
      %s474 = smul.u32 %s467, 4
      %s475 = smul.u32 %s474, 4
      %s476 = smul.addr %s475, 8
      %s477 = scalar_lea.vmem [#allocation2], %s476
      %v478 = vld [vmem:[%s477] sm:$0xff]
      %v479 = vld [vmem:[%s477 + $0x8] sm:$0xff]
      %v480 = vld [vmem:[%s477 + $0x10] sm:$0xff]
      %v481 = vld [vmem:[%s477 + $0x18] sm:$0xff]
      %482 = vmatprep.subr.mxu0 %v461
      %483 = vmatpush1.msra.mxu0 %v460
      %484 = vmatprep.subr.mxu0 %v457
      %485 = vmatpush1.msra.mxu0 %v456
      %486 = vmatprep.subr.mxu0 %v453
      %487 = vmatpush1.msra.mxu0 %v452
      %488 = vmatprep.subr.mxu0 %v449
      %489 = vmatpush1.msra.mxu0 %v448
      %490 = vmatprep.subr.mxu0 %v445
      %491 = vmatpush1.msra.mxu0 %v444
      %492 = vmatprep.subr.mxu0 %v441
      %493 = vmatpush1.msra.mxu0 %v440
      %494 = vmatprep.subr.mxu0 %v437
      %495 = vmatpush1.msra.mxu0 %v436
      %496 = vmatprep.subr.mxu0 %v433
      %497 = vmatpush1.msra.mxu0 %v432
      %498 = vmatprep.subr.mxu0 %v429
      %499 = vmatpush1.msra.mxu0 %v428
      %500 = vmatprep.subr.mxu0 %v425
      %501 = vmatpush1.msra.mxu0 %v424
      %502 = vmatprep.subr.mxu0 %v421
      %503 = vmatpush1.msra.mxu0 %v420
      %504 = vmatprep.subr.mxu0 %v417
      %505 = vmatpush1.msra.mxu0 %v416
      %506 = vmatprep.subr.mxu0 %v413
      %507 = vmatpush1.msra.mxu0 %v412
      %508 = vmatprep.subr.mxu0 %v409
      %509 = vmatpush1.msra.mxu0 %v408
      %510 = vmatprep.subr.mxu0 %v405
      %511 = vmatpush1.msra.mxu0 %v404
      %512 = vmatprep.subr.mxu0 %v401
      %513 = vmatpush1.msra.mxu0 %v400
      %514 = vmatprep.subr.mxu0 0.0
      %515 = vmatpush2.msra.mxu0 0.0
      %516 = vmatprep.subr.mxu0 0.0
      %517 = vmatpush2.msra.mxu0 0.0
      %518 = vmatprep.subr.mxu0 0.0
      %519 = vmatpush2.msra.mxu0 0.0
      %520 = vmatprep.subr.mxu0 0.0
      %521 = vmatpush2.msra.mxu0 0.0
      %522 = vmatprep.subr.mxu0 0.0
      %523 = vmatpush2.msra.mxu0 0.0
      %524 = vmatprep.subr.mxu0 0.0
      %525 = vmatpush2.msra.mxu0 0.0
      %526 = vmatprep.subr.mxu0 0.0
      %527 = vmatpush2.msra.mxu0 0.0
      %528 = vmatprep.subr.mxu0 0.0
      %529 = vmatpush2.msra.mxu0 0.0
      %530 = vmatprep.subr.mxu0 0.0
      %531 = vmatpush2.msra.mxu0 0.0
      %532 = vmatprep.subr.mxu0 0.0
      %533 = vmatpush2.msra.mxu0 0.0
      %534 = vmatprep.subr.mxu0 0.0
      %535 = vmatpush2.msra.mxu0 0.0
      %536 = vmatprep.subr.mxu0 0.0
      %537 = vmatpush2.msra.mxu0 0.0
      %538 = vmatprep.subr.mxu0 0.0
      %539 = vmatpush2.msra.mxu0 0.0
      %540 = vmatprep.subr.mxu0 0.0
      %541 = vmatpush2.msra.mxu0 0.0
      %542 = vmatprep.subr.mxu0 0.0
      %543 = vmatpush2.msra.mxu0 0.0
      %544 = vmatprep.subr.mxu0 0.0
      %545 = vmatpush2.msra.mxu0 0.0
      %546 = vmatprep.mubr.f32.mxu0 0.0
      %547 = vmatmul.mubr.f32.gmra.mxu0 %v472
      %v548 = vpop.f32.mrf.mxu0
      %v549 = vadd.f32 0.0, %v548
      %v550 = vpop.f32.mrf.mxu0
      %v551 = vadd.f32 0.0, %v550
      %552 = vdwg.mxu0
      %553 = vmatprep.subr.mxu0 %v463
      %554 = vmatpush1.msra.mxu0 %v462
      %555 = vmatprep.subr.mxu0 %v459
      %556 = vmatpush1.msra.mxu0 %v458
      %557 = vmatprep.subr.mxu0 %v455
      %558 = vmatpush1.msra.mxu0 %v454
      %559 = vmatprep.subr.mxu0 %v451
      %560 = vmatpush1.msra.mxu0 %v450
      %561 = vmatprep.subr.mxu0 %v447
      %562 = vmatpush1.msra.mxu0 %v446
      %563 = vmatprep.subr.mxu0 %v443
      %564 = vmatpush1.msra.mxu0 %v442
      %565 = vmatprep.subr.mxu0 %v439
      %566 = vmatpush1.msra.mxu0 %v438
      %567 = vmatprep.subr.mxu0 %v435
      %568 = vmatpush1.msra.mxu0 %v434
      %569 = vmatprep.subr.mxu0 %v431
      %570 = vmatpush1.msra.mxu0 %v430
      %571 = vmatprep.subr.mxu0 %v427
      %572 = vmatpush1.msra.mxu0 %v426
      %573 = vmatprep.subr.mxu0 %v423
      %574 = vmatpush1.msra.mxu0 %v422
      %575 = vmatprep.subr.mxu0 %v419
      %576 = vmatpush1.msra.mxu0 %v418
      %577 = vmatprep.subr.mxu0 %v415
      %578 = vmatpush1.msra.mxu0 %v414
      %579 = vmatprep.subr.mxu0 %v411
      %580 = vmatpush1.msra.mxu0 %v410
      %581 = vmatprep.subr.mxu0 %v407
      %582 = vmatpush1.msra.mxu0 %v406
      %583 = vmatprep.subr.mxu0 %v403
      %584 = vmatpush1.msra.mxu0 %v402
      %585 = vmatprep.subr.mxu0 0.0
      %586 = vmatpush2.msra.mxu0 0.0
      %587 = vmatprep.subr.mxu0 0.0
      %588 = vmatpush2.msra.mxu0 0.0
      %589 = vmatprep.subr.mxu0 0.0
      %590 = vmatpush2.msra.mxu0 0.0
      %591 = vmatprep.subr.mxu0 0.0
      %592 = vmatpush2.msra.mxu0 0.0
      %593 = vmatprep.subr.mxu0 0.0
      %594 = vmatpush2.msra.mxu0 0.0
      %595 = vmatprep.subr.mxu0 0.0
      %596 = vmatpush2.msra.mxu0 0.0
      %597 = vmatprep.subr.mxu0 0.0
      %598 = vmatpush2.msra.mxu0 0.0
      %599 = vmatprep.subr.mxu0 0.0
      %600 = vmatpush2.msra.mxu0 0.0
      %601 = vmatprep.subr.mxu0 0.0
      %602 = vmatpush2.msra.mxu0 0.0
      %603 = vmatprep.subr.mxu0 0.0
      %604 = vmatpush2.msra.mxu0 0.0
      %605 = vmatprep.subr.mxu0 0.0
      %606 = vmatpush2.msra.mxu0 0.0
      %607 = vmatprep.subr.mxu0 0.0
      %608 = vmatpush2.msra.mxu0 0.0
      %609 = vmatprep.subr.mxu0 0.0
      %610 = vmatpush2.msra.mxu0 0.0
      %611 = vmatprep.subr.mxu0 0.0
      %612 = vmatpush2.msra.mxu0 0.0
      %613 = vmatprep.subr.mxu0 0.0
      %614 = vmatpush2.msra.mxu0 0.0
      %615 = vmatprep.subr.mxu0 0.0
      %616 = vmatpush2.msra.mxu0 0.0
      %617 = vmatprep.mubr.f32.mxu0 0.0
      %618 = vmatmul.mubr.f32.gmra.mxu0 %v472
      %v619 = vpop.f32.mrf.mxu0
      %v620 = vadd.f32 0.0, %v619
      %v621 = vpop.f32.mrf.mxu0
      %v622 = vadd.f32 0.0, %v621
      %623 = vdwg.mxu0
      %v624 = vadd.f32 %v478, %v549
      %v625 = vadd.f32 %v479, %v551
      %v626 = vadd.f32 %v480, %v620
      %v627 = vadd.f32 %v481, %v622
      %v628 = vxor.u32 %v624, 2147483648
      %v629 = vmul.f32 %v628, 1.442695
      %v630 = vpow.pop %v629
      %v631 = vadd.f32 %v630, 1.0
      %v632 = vrcp.pop %v631
      %v633 = vmul.f32 1.0, %v632
      %v634 = vxor.u32 %v625, 2147483648
      %v635 = vmul.f32 %v634, 1.442695
      %v636 = vpow.pop %v635
      %v637 = vadd.f32 %v636, 1.0
      %v638 = vrcp.pop %v637
      %v639 = vmul.f32 1.0, %v638
      %v640 = vtanh.pop %v626
      %v641 = vxor.u32 %v627, 2147483648
      %v642 = vmul.f32 %v641, 1.442695
      %v643 = vpow.pop %v642
      %v644 = vadd.f32 %v643, 1.0
      %v645 = vrcp.pop %v644
      %v646 = vmul.f32 1.0, %v645
      %v647 = vmul.f32 %v639, %v473
      %v648 = vmul.f32 %v633, %v640
      %v649 = vadd.f32 %v647, %v648
      %v650 = vtanh.pop %v649
      %v651 = vmul.f32 %v646, %v650
      %s652 = smul.u32 %s474, 8
      %s653 = scalar_lea.vmem [#allocation3], %s652
      %654 = vst [vmem:[%s653] sm:$0xff] %v651
      %s655 = sadd.s32 %s474, 1
      %s656 = smul.u32 %s655, 4
      %s657 = smul.addr %s656, 8
      %s658 = scalar_lea.vmem [#allocation2], %s657
      %v659 = vld [vmem:[%s658] sm:$0xff]
      %v660 = vld [vmem:[%s658 + $0x8] sm:$0xff]
      %v661 = vld [vmem:[%s658 + $0x10] sm:$0xff]
      %v662 = vld [vmem:[%s658 + $0x18] sm:$0xff]
      %663 = vmatprep.subr.mxu0 %v461
      %664 = vmatpush1.msra.mxu0 %v460
      %665 = vmatprep.subr.mxu0 %v457
      %666 = vmatpush1.msra.mxu0 %v456
      %667 = vmatprep.subr.mxu0 %v453
      %668 = vmatpush1.msra.mxu0 %v452
      %669 = vmatprep.subr.mxu0 %v449
      %670 = vmatpush1.msra.mxu0 %v448
      %671 = vmatprep.subr.mxu0 %v445
      %672 = vmatpush1.msra.mxu0 %v444
      %673 = vmatprep.subr.mxu0 %v441
      %674 = vmatpush1.msra.mxu0 %v440
      %675 = vmatprep.subr.mxu0 %v437
      %676 = vmatpush1.msra.mxu0 %v436
      %677 = vmatprep.subr.mxu0 %v433
      %678 = vmatpush1.msra.mxu0 %v432
      %679 = vmatprep.subr.mxu0 %v429
      %680 = vmatpush1.msra.mxu0 %v428
      %681 = vmatprep.subr.mxu0 %v425
      %682 = vmatpush1.msra.mxu0 %v424
      %683 = vmatprep.subr.mxu0 %v421
      %684 = vmatpush1.msra.mxu0 %v420
      %685 = vmatprep.subr.mxu0 %v417
      %686 = vmatpush1.msra.mxu0 %v416
      %687 = vmatprep.subr.mxu0 %v413
      %688 = vmatpush1.msra.mxu0 %v412
      %689 = vmatprep.subr.mxu0 %v409
      %690 = vmatpush1.msra.mxu0 %v408
      %691 = vmatprep.subr.mxu0 %v405
      %692 = vmatpush1.msra.mxu0 %v404
      %693 = vmatprep.subr.mxu0 %v401
      %694 = vmatpush1.msra.mxu0 %v400
      %695 = vmatprep.subr.mxu0 0.0
      %696 = vmatpush2.msra.mxu0 0.0
      %697 = vmatprep.subr.mxu0 0.0
      %698 = vmatpush2.msra.mxu0 0.0
      %699 = vmatprep.subr.mxu0 0.0
      %700 = vmatpush2.msra.mxu0 0.0
      %701 = vmatprep.subr.mxu0 0.0
      %702 = vmatpush2.msra.mxu0 0.0
      %703 = vmatprep.subr.mxu0 0.0
      %704 = vmatpush2.msra.mxu0 0.0
      %705 = vmatprep.subr.mxu0 0.0
      %706 = vmatpush2.msra.mxu0 0.0
      %707 = vmatprep.subr.mxu0 0.0
      %708 = vmatpush2.msra.mxu0 0.0
      %709 = vmatprep.subr.mxu0 0.0
      %710 = vmatpush2.msra.mxu0 0.0
      %711 = vmatprep.subr.mxu0 0.0
      %712 = vmatpush2.msra.mxu0 0.0
      %713 = vmatprep.subr.mxu0 0.0
      %714 = vmatpush2.msra.mxu0 0.0
      %715 = vmatprep.subr.mxu0 0.0
      %716 = vmatpush2.msra.mxu0 0.0
      %717 = vmatprep.subr.mxu0 0.0
      %718 = vmatpush2.msra.mxu0 0.0
      %719 = vmatprep.subr.mxu0 0.0
      %720 = vmatpush2.msra.mxu0 0.0
      %721 = vmatprep.subr.mxu0 0.0
      %722 = vmatpush2.msra.mxu0 0.0
      %723 = vmatprep.subr.mxu0 0.0
      %724 = vmatpush2.msra.mxu0 0.0
      %725 = vmatprep.subr.mxu0 0.0
      %726 = vmatpush2.msra.mxu0 0.0
      %727 = vmatprep.mubr.f32.mxu0 0.0
      %728 = vmatmul.mubr.f32.gmra.mxu0 %v651
      %v729 = vpop.f32.mrf.mxu0
      %v730 = vadd.f32 0.0, %v729
      %v731 = vpop.f32.mrf.mxu0
      %v732 = vadd.f32 0.0, %v731
      %733 = vdwg.mxu0
      %734 = vmatprep.subr.mxu0 %v463
      %735 = vmatpush1.msra.mxu0 %v462
      %736 = vmatprep.subr.mxu0 %v459
      %737 = vmatpush1.msra.mxu0 %v458
      %738 = vmatprep.subr.mxu0 %v455
      %739 = vmatpush1.msra.mxu0 %v454
      %740 = vmatprep.subr.mxu0 %v451
      %741 = vmatpush1.msra.mxu0 %v450
      %742 = vmatprep.subr.mxu0 %v447
      %743 = vmatpush1.msra.mxu0 %v446
      %744 = vmatprep.subr.mxu0 %v443
      %745 = vmatpush1.msra.mxu0 %v442
      %746 = vmatprep.subr.mxu0 %v439
      %747 = vmatpush1.msra.mxu0 %v438
      %748 = vmatprep.subr.mxu0 %v435
      %749 = vmatpush1.msra.mxu0 %v434
      %750 = vmatprep.subr.mxu0 %v431
      %751 = vmatpush1.msra.mxu0 %v430
      %752 = vmatprep.subr.mxu0 %v427
      %753 = vmatpush1.msra.mxu0 %v426
      %754 = vmatprep.subr.mxu0 %v423
      %755 = vmatpush1.msra.mxu0 %v422
      %756 = vmatprep.subr.mxu0 %v419
      %757 = vmatpush1.msra.mxu0 %v418
      %758 = vmatprep.subr.mxu0 %v415
      %759 = vmatpush1.msra.mxu0 %v414
      %760 = vmatprep.subr.mxu0 %v411
      %761 = vmatpush1.msra.mxu0 %v410
      %762 = vmatprep.subr.mxu0 %v407
      %763 = vmatpush1.msra.mxu0 %v406
      %764 = vmatprep.subr.mxu0 %v403
      %765 = vmatpush1.msra.mxu0 %v402
      %766 = vmatprep.subr.mxu0 0.0
      %767 = vmatpush2.msra.mxu0 0.0
      %768 = vmatprep.subr.mxu0 0.0
      %769 = vmatpush2.msra.mxu0 0.0
      %770 = vmatprep.subr.mxu0 0.0
      %771 = vmatpush2.msra.mxu0 0.0
      %772 = vmatprep.subr.mxu0 0.0
      %773 = vmatpush2.msra.mxu0 0.0
      %774 = vmatprep.subr.mxu0 0.0
      %775 = vmatpush2.msra.mxu0 0.0
      %776 = vmatprep.subr.mxu0 0.0
      %777 = vmatpush2.msra.mxu0 0.0
      %778 = vmatprep.subr.mxu0 0.0
      %779 = vmatpush2.msra.mxu0 0.0
      %780 = vmatprep.subr.mxu0 0.0
      %781 = vmatpush2.msra.mxu0 0.0
      %782 = vmatprep.subr.mxu0 0.0
      %783 = vmatpush2.msra.mxu0 0.0
      %784 = vmatprep.subr.mxu0 0.0
      %785 = vmatpush2.msra.mxu0 0.0
      %786 = vmatprep.subr.mxu0 0.0
      %787 = vmatpush2.msra.mxu0 0.0
      %788 = vmatprep.subr.mxu0 0.0
      %789 = vmatpush2.msra.mxu0 0.0
      %790 = vmatprep.subr.mxu0 0.0
      %791 = vmatpush2.msra.mxu0 0.0
      %792 = vmatprep.subr.mxu0 0.0
      %793 = vmatpush2.msra.mxu0 0.0
      %794 = vmatprep.subr.mxu0 0.0
      %795 = vmatpush2.msra.mxu0 0.0
      %796 = vmatprep.subr.mxu0 0.0
      %797 = vmatpush2.msra.mxu0 0.0
      %798 = vmatprep.mubr.f32.mxu0 0.0
      %799 = vmatmul.mubr.f32.gmra.mxu0 %v651
      %v800 = vpop.f32.mrf.mxu0
      %v801 = vadd.f32 0.0, %v800
      %v802 = vpop.f32.mrf.mxu0
      %v803 = vadd.f32 0.0, %v802
      %804 = vdwg.mxu0
      %v805 = vadd.f32 %v659, %v730
      %v806 = vadd.f32 %v660, %v732
      %v807 = vadd.f32 %v661, %v801
      %v808 = vadd.f32 %v662, %v803
      %v809 = vxor.u32 %v805, 2147483648
      %v810 = vmul.f32 %v809, 1.442695
      %v811 = vpow.pop %v810
      %v812 = vadd.f32 %v811, 1.0
      %v813 = vrcp.pop %v812
      %v814 = vmul.f32 1.0, %v813
      %v815 = vxor.u32 %v806, 2147483648
      %v816 = vmul.f32 %v815, 1.442695
      %v817 = vpow.pop %v816
      %v818 = vadd.f32 %v817, 1.0
      %v819 = vrcp.pop %v818
      %v820 = vmul.f32 1.0, %v819
      %v821 = vtanh.pop %v807
      %v822 = vxor.u32 %v808, 2147483648
      %v823 = vmul.f32 %v822, 1.442695
      %v824 = vpow.pop %v823
      %v825 = vadd.f32 %v824, 1.0
      %v826 = vrcp.pop %v825
      %v827 = vmul.f32 1.0, %v826
      %v828 = vmul.f32 %v820, %v649
      %v829 = vmul.f32 %v814, %v821
      %v830 = vadd.f32 %v828, %v829
      %v831 = vtanh.pop %v830
      %v832 = vmul.f32 %v827, %v831
      %s833 = smul.u32 %s655, 8
      %s834 = scalar_lea.vmem [#allocation3], %s833
      %835 = vst [vmem:[%s834] sm:$0xff] %v832
      %s836 = sadd.s32 %s474, 2
      %s837 = smul.u32 %s836, 4
      %s838 = smul.addr %s837, 8
      %s839 = scalar_lea.vmem [#allocation2], %s838
      %v840 = vld [vmem:[%s839] sm:$0xff]
      %v841 = vld [vmem:[%s839 + $0x8] sm:$0xff]
      %v842 = vld [vmem:[%s839 + $0x10] sm:$0xff]
      %v843 = vld [vmem:[%s839 + $0x18] sm:$0xff]
      %844 = vmatprep.subr.mxu0 %v461
      %845 = vmatpush1.msra.mxu0 %v460
      %846 = vmatprep.subr.mxu0 %v457
      %847 = vmatpush1.msra.mxu0 %v456
      %848 = vmatprep.subr.mxu0 %v453
      %849 = vmatpush1.msra.mxu0 %v452
      %850 = vmatprep.subr.mxu0 %v449
      %851 = vmatpush1.msra.mxu0 %v448
      %852 = vmatprep.subr.mxu0 %v445
      %853 = vmatpush1.msra.mxu0 %v444
      %854 = vmatprep.subr.mxu0 %v441
      %855 = vmatpush1.msra.mxu0 %v440
      %856 = vmatprep.subr.mxu0 %v437
      %857 = vmatpush1.msra.mxu0 %v436
      %858 = vmatprep.subr.mxu0 %v433
      %859 = vmatpush1.msra.mxu0 %v432
      %860 = vmatprep.subr.mxu0 %v429
      %861 = vmatpush1.msra.mxu0 %v428
      %862 = vmatprep.subr.mxu0 %v425
      %863 = vmatpush1.msra.mxu0 %v424
      %864 = vmatprep.subr.mxu0 %v421
      %865 = vmatpush1.msra.mxu0 %v420
      %866 = vmatprep.subr.mxu0 %v417
      %867 = vmatpush1.msra.mxu0 %v416
      %868 = vmatprep.subr.mxu0 %v413
      %869 = vmatpush1.msra.mxu0 %v412
      %870 = vmatprep.subr.mxu0 %v409
      %871 = vmatpush1.msra.mxu0 %v408
      %872 = vmatprep.subr.mxu0 %v405
      %873 = vmatpush1.msra.mxu0 %v404
      %874 = vmatprep.subr.mxu0 %v401
      %875 = vmatpush1.msra.mxu0 %v400
      %876 = vmatprep.subr.mxu0 0.0
      %877 = vmatpush2.msra.mxu0 0.0
      %878 = vmatprep.subr.mxu0 0.0
      %879 = vmatpush2.msra.mxu0 0.0
      %880 = vmatprep.subr.mxu0 0.0
      %881 = vmatpush2.msra.mxu0 0.0
      %882 = vmatprep.subr.mxu0 0.0
      %883 = vmatpush2.msra.mxu0 0.0
      %884 = vmatprep.subr.mxu0 0.0
      %885 = vmatpush2.msra.mxu0 0.0
      %886 = vmatprep.subr.mxu0 0.0
      %887 = vmatpush2.msra.mxu0 0.0
      %888 = vmatprep.subr.mxu0 0.0
      %889 = vmatpush2.msra.mxu0 0.0
      %890 = vmatprep.subr.mxu0 0.0
      %891 = vmatpush2.msra.mxu0 0.0
      %892 = vmatprep.subr.mxu0 0.0
      %893 = vmatpush2.msra.mxu0 0.0
      %894 = vmatprep.subr.mxu0 0.0
      %895 = vmatpush2.msra.mxu0 0.0
      %896 = vmatprep.subr.mxu0 0.0
      %897 = vmatpush2.msra.mxu0 0.0
      %898 = vmatprep.subr.mxu0 0.0
      %899 = vmatpush2.msra.mxu0 0.0
      %900 = vmatprep.subr.mxu0 0.0
      %901 = vmatpush2.msra.mxu0 0.0
      %902 = vmatprep.subr.mxu0 0.0
      %903 = vmatpush2.msra.mxu0 0.0
      %904 = vmatprep.subr.mxu0 0.0
      %905 = vmatpush2.msra.mxu0 0.0
      %906 = vmatprep.subr.mxu0 0.0
      %907 = vmatpush2.msra.mxu0 0.0
      %908 = vmatprep.mubr.f32.mxu0 0.0
      %909 = vmatmul.mubr.f32.gmra.mxu0 %v832
      %v910 = vpop.f32.mrf.mxu0
      %v911 = vadd.f32 0.0, %v910
      %v912 = vpop.f32.mrf.mxu0
      %v913 = vadd.f32 0.0, %v912
      %914 = vdwg.mxu0
      %915 = vmatprep.subr.mxu0 %v463
      %916 = vmatpush1.msra.mxu0 %v462
      %917 = vmatprep.subr.mxu0 %v459
      %918 = vmatpush1.msra.mxu0 %v458
      %919 = vmatprep.subr.mxu0 %v455
      %920 = vmatpush1.msra.mxu0 %v454
      %921 = vmatprep.subr.mxu0 %v451
      %922 = vmatpush1.msra.mxu0 %v450
      %923 = vmatprep.subr.mxu0 %v447
      %924 = vmatpush1.msra.mxu0 %v446
      %925 = vmatprep.subr.mxu0 %v443
      %926 = vmatpush1.msra.mxu0 %v442
      %927 = vmatprep.subr.mxu0 %v439
      %928 = vmatpush1.msra.mxu0 %v438
      %929 = vmatprep.subr.mxu0 %v435
      %930 = vmatpush1.msra.mxu0 %v434
      %931 = vmatprep.subr.mxu0 %v431
      %932 = vmatpush1.msra.mxu0 %v430
      %933 = vmatprep.subr.mxu0 %v427
      %934 = vmatpush1.msra.mxu0 %v426
      %935 = vmatprep.subr.mxu0 %v423
      %936 = vmatpush1.msra.mxu0 %v422
      %937 = vmatprep.subr.mxu0 %v419
      %938 = vmatpush1.msra.mxu0 %v418
      %939 = vmatprep.subr.mxu0 %v415
      %940 = vmatpush1.msra.mxu0 %v414
      %941 = vmatprep.subr.mxu0 %v411
      %942 = vmatpush1.msra.mxu0 %v410
      %943 = vmatprep.subr.mxu0 %v407
      %944 = vmatpush1.msra.mxu0 %v406
      %945 = vmatprep.subr.mxu0 %v403
      %946 = vmatpush1.msra.mxu0 %v402
      %947 = vmatprep.subr.mxu0 0.0
      %948 = vmatpush2.msra.mxu0 0.0
      %949 = vmatprep.subr.mxu0 0.0
      %950 = vmatpush2.msra.mxu0 0.0
      %951 = vmatprep.subr.mxu0 0.0
      %952 = vmatpush2.msra.mxu0 0.0
      %953 = vmatprep.subr.mxu0 0.0
      %954 = vmatpush2.msra.mxu0 0.0
      %955 = vmatprep.subr.mxu0 0.0
      %956 = vmatpush2.msra.mxu0 0.0
      %957 = vmatprep.subr.mxu0 0.0
      %958 = vmatpush2.msra.mxu0 0.0
      %959 = vmatprep.subr.mxu0 0.0
      %960 = vmatpush2.msra.mxu0 0.0
      %961 = vmatprep.subr.mxu0 0.0
      %962 = vmatpush2.msra.mxu0 0.0
      %963 = vmatprep.subr.mxu0 0.0
      %964 = vmatpush2.msra.mxu0 0.0
      %965 = vmatprep.subr.mxu0 0.0
      %966 = vmatpush2.msra.mxu0 0.0
      %967 = vmatprep.subr.mxu0 0.0
      %968 = vmatpush2.msra.mxu0 0.0
      %969 = vmatprep.subr.mxu0 0.0
      %970 = vmatpush2.msra.mxu0 0.0
      %971 = vmatprep.subr.mxu0 0.0
      %972 = vmatpush2.msra.mxu0 0.0
      %973 = vmatprep.subr.mxu0 0.0
      %974 = vmatpush2.msra.mxu0 0.0
      %975 = vmatprep.subr.mxu0 0.0
      %976 = vmatpush2.msra.mxu0 0.0
      %977 = vmatprep.subr.mxu0 0.0
      %978 = vmatpush2.msra.mxu0 0.0
      %979 = vmatprep.mubr.f32.mxu0 0.0
      %980 = vmatmul.mubr.f32.gmra.mxu0 %v832
      %v981 = vpop.f32.mrf.mxu0
      %v982 = vadd.f32 0.0, %v981
      %v983 = vpop.f32.mrf.mxu0
      %v984 = vadd.f32 0.0, %v983
      %985 = vdwg.mxu0
      %v986 = vadd.f32 %v840, %v911
      %v987 = vadd.f32 %v841, %v913
      %v988 = vadd.f32 %v842, %v982
      %v989 = vadd.f32 %v843, %v984
      %v990 = vxor.u32 %v986, 2147483648
      %v991 = vmul.f32 %v990, 1.442695
      %v992 = vpow.pop %v991
      %v993 = vadd.f32 %v992, 1.0
      %v994 = vrcp.pop %v993
      %v995 = vmul.f32 1.0, %v994
      %v996 = vxor.u32 %v987, 2147483648
      %v997 = vmul.f32 %v996, 1.442695
      %v998 = vpow.pop %v997
      %v999 = vadd.f32 %v998, 1.0
      %v1000 = vrcp.pop %v999
      %v1001 = vmul.f32 1.0, %v1000
      %v1002 = vtanh.pop %v988
      %v1003 = vxor.u32 %v989, 2147483648
      %v1004 = vmul.f32 %v1003, 1.442695
      %v1005 = vpow.pop %v1004
      %v1006 = vadd.f32 %v1005, 1.0
      %v1007 = vrcp.pop %v1006
      %v1008 = vmul.f32 1.0, %v1007
      %v1009 = vmul.f32 %v1001, %v830
      %v1010 = vmul.f32 %v995, %v1002
      %v1011 = vadd.f32 %v1009, %v1010
      %v1012 = vtanh.pop %v1011
      %v1013 = vmul.f32 %v1008, %v1012
      %s1014 = smul.u32 %s836, 8
      %s1015 = scalar_lea.vmem [#allocation3], %s1014
      %1016 = vst [vmem:[%s1015] sm:$0xff] %v1013
      %s1017 = sadd.s32 %s474, 3
      %s1018 = smul.u32 %s1017, 4
      %s1019 = smul.addr %s1018, 8
      %s1020 = scalar_lea.vmem [#allocation2], %s1019
      %v1021 = vld [vmem:[%s1020] sm:$0xff]
      %v1022 = vld [vmem:[%s1020 + $0x8] sm:$0xff]
      %v1023 = vld [vmem:[%s1020 + $0x10] sm:$0xff]
      %v1024 = vld [vmem:[%s1020 + $0x18] sm:$0xff]
      %1025 = vmatprep.subr.mxu0 %v461
      %1026 = vmatpush1.msra.mxu0 %v460
      %1027 = vmatprep.subr.mxu0 %v457
      %1028 = vmatpush1.msra.mxu0 %v456
      %1029 = vmatprep.subr.mxu0 %v453
      %1030 = vmatpush1.msra.mxu0 %v452
      %1031 = vmatprep.subr.mxu0 %v449
      %1032 = vmatpush1.msra.mxu0 %v448
      %1033 = vmatprep.subr.mxu0 %v445
      %1034 = vmatpush1.msra.mxu0 %v444
      %1035 = vmatprep.subr.mxu0 %v441
      %1036 = vmatpush1.msra.mxu0 %v440
      %1037 = vmatprep.subr.mxu0 %v437
      %1038 = vmatpush1.msra.mxu0 %v436
      %1039 = vmatprep.subr.mxu0 %v433
      %1040 = vmatpush1.msra.mxu0 %v432
      %1041 = vmatprep.subr.mxu0 %v429
      %1042 = vmatpush1.msra.mxu0 %v428
      %1043 = vmatprep.subr.mxu0 %v425
      %1044 = vmatpush1.msra.mxu0 %v424
      %1045 = vmatprep.subr.mxu0 %v421
      %1046 = vmatpush1.msra.mxu0 %v420
      %1047 = vmatprep.subr.mxu0 %v417
      %1048 = vmatpush1.msra.mxu0 %v416
      %1049 = vmatprep.subr.mxu0 %v413
      %1050 = vmatpush1.msra.mxu0 %v412
      %1051 = vmatprep.subr.mxu0 %v409
      %1052 = vmatpush1.msra.mxu0 %v408
      %1053 = vmatprep.subr.mxu0 %v405
      %1054 = vmatpush1.msra.mxu0 %v404
      %1055 = vmatprep.subr.mxu0 %v401
      %1056 = vmatpush1.msra.mxu0 %v400
      %1057 = vmatprep.subr.mxu0 0.0
      %1058 = vmatpush2.msra.mxu0 0.0
      %1059 = vmatprep.subr.mxu0 0.0
      %1060 = vmatpush2.msra.mxu0 0.0
      %1061 = vmatprep.subr.mxu0 0.0
      %1062 = vmatpush2.msra.mxu0 0.0
      %1063 = vmatprep.subr.mxu0 0.0
      %1064 = vmatpush2.msra.mxu0 0.0
      %1065 = vmatprep.subr.mxu0 0.0
      %1066 = vmatpush2.msra.mxu0 0.0
      %1067 = vmatprep.subr.mxu0 0.0
      %1068 = vmatpush2.msra.mxu0 0.0
      %1069 = vmatprep.subr.mxu0 0.0
      %1070 = vmatpush2.msra.mxu0 0.0
      %1071 = vmatprep.subr.mxu0 0.0
      %1072 = vmatpush2.msra.mxu0 0.0
      %1073 = vmatprep.subr.mxu0 0.0
      %1074 = vmatpush2.msra.mxu0 0.0
      %1075 = vmatprep.subr.mxu0 0.0
      %1076 = vmatpush2.msra.mxu0 0.0
      %1077 = vmatprep.subr.mxu0 0.0
      %1078 = vmatpush2.msra.mxu0 0.0
      %1079 = vmatprep.subr.mxu0 0.0
      %1080 = vmatpush2.msra.mxu0 0.0
      %1081 = vmatprep.subr.mxu0 0.0
      %1082 = vmatpush2.msra.mxu0 0.0
      %1083 = vmatprep.subr.mxu0 0.0
      %1084 = vmatpush2.msra.mxu0 0.0
      %1085 = vmatprep.subr.mxu0 0.0
      %1086 = vmatpush2.msra.mxu0 0.0
      %1087 = vmatprep.subr.mxu0 0.0
      %1088 = vmatpush2.msra.mxu0 0.0
      %1089 = vmatprep.mubr.f32.mxu0 0.0
      %1090 = vmatmul.mubr.f32.gmra.mxu0 %v1013
      %v1091 = vpop.f32.mrf.mxu0
      %v1092 = vadd.f32 0.0, %v1091
      %v1093 = vpop.f32.mrf.mxu0
      %v1094 = vadd.f32 0.0, %v1093
      %1095 = vdwg.mxu0
      %1096 = vmatprep.subr.mxu0 %v463
      %1097 = vmatpush1.msra.mxu0 %v462
      %1098 = vmatprep.subr.mxu0 %v459
      %1099 = vmatpush1.msra.mxu0 %v458
      %1100 = vmatprep.subr.mxu0 %v455
      %1101 = vmatpush1.msra.mxu0 %v454
      %1102 = vmatprep.subr.mxu0 %v451
      %1103 = vmatpush1.msra.mxu0 %v450
      %1104 = vmatprep.subr.mxu0 %v447
      %1105 = vmatpush1.msra.mxu0 %v446
      %1106 = vmatprep.subr.mxu0 %v443
      %1107 = vmatpush1.msra.mxu0 %v442
      %1108 = vmatprep.subr.mxu0 %v439
      %1109 = vmatpush1.msra.mxu0 %v438
      %1110 = vmatprep.subr.mxu0 %v435
      %1111 = vmatpush1.msra.mxu0 %v434
      %1112 = vmatprep.subr.mxu0 %v431
      %1113 = vmatpush1.msra.mxu0 %v430
      %1114 = vmatprep.subr.mxu0 %v427
      %1115 = vmatpush1.msra.mxu0 %v426
      %1116 = vmatprep.subr.mxu0 %v423
      %1117 = vmatpush1.msra.mxu0 %v422
      %1118 = vmatprep.subr.mxu0 %v419
      %1119 = vmatpush1.msra.mxu0 %v418
      %1120 = vmatprep.subr.mxu0 %v415
      %1121 = vmatpush1.msra.mxu0 %v414
      %1122 = vmatprep.subr.mxu0 %v411
      %1123 = vmatpush1.msra.mxu0 %v410
      %1124 = vmatprep.subr.mxu0 %v407
      %1125 = vmatpush1.msra.mxu0 %v406
      %1126 = vmatprep.subr.mxu0 %v403
      %1127 = vmatpush1.msra.mxu0 %v402
      %1128 = vmatprep.subr.mxu0 0.0
      %1129 = vmatpush2.msra.mxu0 0.0
      %1130 = vmatprep.subr.mxu0 0.0
      %1131 = vmatpush2.msra.mxu0 0.0
      %1132 = vmatprep.subr.mxu0 0.0
      %1133 = vmatpush2.msra.mxu0 0.0
      %1134 = vmatprep.subr.mxu0 0.0
      %1135 = vmatpush2.msra.mxu0 0.0
      %1136 = vmatprep.subr.mxu0 0.0
      %1137 = vmatpush2.msra.mxu0 0.0
      %1138 = vmatprep.subr.mxu0 0.0
      %1139 = vmatpush2.msra.mxu0 0.0
      %1140 = vmatprep.subr.mxu0 0.0
      %1141 = vmatpush2.msra.mxu0 0.0
      %1142 = vmatprep.subr.mxu0 0.0
      %1143 = vmatpush2.msra.mxu0 0.0
      %1144 = vmatprep.subr.mxu0 0.0
      %1145 = vmatpush2.msra.mxu0 0.0
      %1146 = vmatprep.subr.mxu0 0.0
      %1147 = vmatpush2.msra.mxu0 0.0
      %1148 = vmatprep.subr.mxu0 0.0
      %1149 = vmatpush2.msra.mxu0 0.0
      %1150 = vmatprep.subr.mxu0 0.0
      %1151 = vmatpush2.msra.mxu0 0.0
      %1152 = vmatprep.subr.mxu0 0.0
      %1153 = vmatpush2.msra.mxu0 0.0
      %1154 = vmatprep.subr.mxu0 0.0
      %1155 = vmatpush2.msra.mxu0 0.0
      %1156 = vmatprep.subr.mxu0 0.0
      %1157 = vmatpush2.msra.mxu0 0.0
      %1158 = vmatprep.subr.mxu0 0.0
      %1159 = vmatpush2.msra.mxu0 0.0
      %1160 = vmatprep.mubr.f32.mxu0 0.0
      %1161 = vmatmul.mubr.f32.gmra.mxu0 %v1013
      %v1162 = vpop.f32.mrf.mxu0
      %v1163 = vadd.f32 0.0, %v1162
      %v1164 = vpop.f32.mrf.mxu0
      %v1165 = vadd.f32 0.0, %v1164
      %1166 = vdwg.mxu0
      %v1167 = vadd.f32 %v1021, %v1092
      %v1168 = vadd.f32 %v1022, %v1094
      %v1169 = vadd.f32 %v1023, %v1163
      %v1170 = vadd.f32 %v1024, %v1165
      %v1171 = vxor.u32 %v1167, 2147483648
      %v1172 = vmul.f32 %v1171, 1.442695
      %v1173 = vpow.pop %v1172
      %v1174 = vadd.f32 %v1173, 1.0
      %v1175 = vrcp.pop %v1174
      %v1176 = vmul.f32 1.0, %v1175
      %v1177 = vxor.u32 %v1168, 2147483648
      %v1178 = vmul.f32 %v1177, 1.442695
      %v1179 = vpow.pop %v1178
      %v1180 = vadd.f32 %v1179, 1.0
      %v1181 = vrcp.pop %v1180
      %v1182 = vmul.f32 1.0, %v1181
      %v1183 = vtanh.pop %v1169
      %v1184 = vxor.u32 %v1170, 2147483648
      %v1185 = vmul.f32 %v1184, 1.442695
      %v1186 = vpow.pop %v1185
      %v1187 = vadd.f32 %v1186, 1.0
      %v1188 = vrcp.pop %v1187
      %v1189 = vmul.f32 1.0, %v1188
      %v1190 = vmul.f32 %v1182, %v1011
      %v1191 = vmul.f32 %v1176, %v1183
      %v1192 = vadd.f32 %v1190, %v1191
      %v1193 = vtanh.pop %v1192
      %v1194 = vmul.f32 %v1189, %v1193
      %s1195 = smul.u32 %s1017, 8
      %s1196 = scalar_lea.vmem [#allocation3], %s1195
      %1197 = vst [vmem:[%s1196] sm:$0xff] %v1194
    $region54: #{tpu_custom_call.1} parent=1 // loop_footer
      %s471 = sadd.s32 1, %s467
    $region55: #{tpu_custom_call.1} parent=1 // loop_footer_branch
      %466 = sbr.rel target = $region51
    $region56: #{tpu_custom_call.1} parent=1 // loop_exit
      _
    %1198 = vst [vmem:[#allocation4] sm:$0xff] %v472
    %1199 = vst [vmem:[#allocation5] sm:$0xff] %v473
    %v1200 = vld [vmem:[#allocation3] sm:$0xff]
    %v1201 = vld [vmem:[#allocation3 + $0x8] sm:$0xff]
    %v1202 = vld [vmem:[#allocation3 + $0x10] sm:$0xff]
    %v1203 = vld [vmem:[#allocation3 + $0x18] sm:$0xff]
    %v1204 = vld [vmem:[#allocation3 + $0x20] sm:$0xff]
    %v1205 = vld [vmem:[#allocation3 + $0x28] sm:$0xff]
    %v1206 = vld [vmem:[#allocation3 + $0x30] sm:$0xff]
    %v1207 = vld [vmem:[#allocation3 + $0x38] sm:$0xff]
    %v1208 = vld [vmem:[#allocation12] sm:$0xff]
    %v1209 = vld [vmem:[#allocation12 + $0x8] sm:$0xff]
    %v1210 = vld [vmem:[#allocation12 + $0x10] sm:$0xff]
    %v1211 = vld [vmem:[#allocation12 + $0x18] sm:$0xff]
    %v1212 = vld [vmem:[#allocation12 + $0x20] sm:$0xff]
    %v1213 = vld [vmem:[#allocation12 + $0x28] sm:$0xff]
    %v1214 = vld [vmem:[#allocation12 + $0x30] sm:$0xff]
    %v1215 = vld [vmem:[#allocation12 + $0x38] sm:$0xff]
    %v1216 = vld [vmem:[#allocation12 + $0x40] sm:$0xff]
    %v1217 = vld [vmem:[#allocation12 + $0x48] sm:$0xff]
    %v1218 = vld [vmem:[#allocation12 + $0x50] sm:$0xff]
    %v1219 = vld [vmem:[#allocation12 + $0x58] sm:$0xff]
    %v1220 = vld [vmem:[#allocation12 + $0x60] sm:$0xff]
    %v1221 = vld [vmem:[#allocation12 + $0x68] sm:$0xff]
    %v1222 = vld [vmem:[#allocation12 + $0x70] sm:$0xff]
    %v1223 = vld [vmem:[#allocation12 + $0x78] sm:$0xff]
    %v1224 = vld [vmem:[%s5] sm:$0x1]
    %v1226 = vlaneseq
    %v1227 = vshrl.u32 %v1226, 7
    %v1228 = vsub.s32 0, %v1227
    %v1229 = vrot.slane %v1224, %v1228
    %1231 = vmatprep.subr.mxu0 0.0
    %1232 = vmatpush1.msra.mxu0 %v1223
    %1233 = vmatprep.subr.mxu0 0.0
    %1234 = vmatpush1.msra.mxu0 %v1222
    %1235 = vmatprep.subr.mxu0 0.0
    %1236 = vmatpush1.msra.mxu0 %v1221
    %1237 = vmatprep.subr.mxu0 0.0
    %1238 = vmatpush1.msra.mxu0 %v1220
    %1239 = vmatprep.subr.mxu0 0.0
    %1240 = vmatpush1.msra.mxu0 %v1219
    %1241 = vmatprep.subr.mxu0 0.0
    %1242 = vmatpush1.msra.mxu0 %v1218
    %1243 = vmatprep.subr.mxu0 0.0
    %1244 = vmatpush1.msra.mxu0 %v1217
    %1245 = vmatprep.subr.mxu0 0.0
    %1246 = vmatpush1.msra.mxu0 %v1216
    %1247 = vmatprep.subr.mxu0 0.0
    %1248 = vmatpush1.msra.mxu0 %v1215
    %1249 = vmatprep.subr.mxu0 0.0
    %1250 = vmatpush1.msra.mxu0 %v1214
    %1251 = vmatprep.subr.mxu0 0.0
    %1252 = vmatpush1.msra.mxu0 %v1213
    %1253 = vmatprep.subr.mxu0 0.0
    %1254 = vmatpush1.msra.mxu0 %v1212
    %1255 = vmatprep.subr.mxu0 0.0
    %1256 = vmatpush1.msra.mxu0 %v1211
    %1257 = vmatprep.subr.mxu0 0.0
    %1258 = vmatpush1.msra.mxu0 %v1210
    %1259 = vmatprep.subr.mxu0 0.0
    %1260 = vmatpush1.msra.mxu0 %v1209
    %1261 = vmatprep.subr.mxu0 0.0
    %1262 = vmatpush1.msra.mxu0 %v1208
    %1263 = vmatprep.subr.mxu0 0.0
    %1264 = vmatpush2.msra.mxu0 0.0
    %1265 = vmatprep.subr.mxu0 0.0
    %1266 = vmatpush2.msra.mxu0 0.0
    %1267 = vmatprep.subr.mxu0 0.0
    %1268 = vmatpush2.msra.mxu0 0.0
    %1269 = vmatprep.subr.mxu0 0.0
    %1270 = vmatpush2.msra.mxu0 0.0
    %1271 = vmatprep.subr.mxu0 0.0
    %1272 = vmatpush2.msra.mxu0 0.0
    %1273 = vmatprep.subr.mxu0 0.0
    %1274 = vmatpush2.msra.mxu0 0.0
    %1275 = vmatprep.subr.mxu0 0.0
    %1276 = vmatpush2.msra.mxu0 0.0
    %1277 = vmatprep.subr.mxu0 0.0
    %1278 = vmatpush2.msra.mxu0 0.0
    %1279 = vmatprep.subr.mxu0 0.0
    %1280 = vmatpush2.msra.mxu0 0.0
    %1281 = vmatprep.subr.mxu0 0.0
    %1282 = vmatpush2.msra.mxu0 0.0
    %1283 = vmatprep.subr.mxu0 0.0
    %1284 = vmatpush2.msra.mxu0 0.0
    %1285 = vmatprep.subr.mxu0 0.0
    %1286 = vmatpush2.msra.mxu0 0.0
    %1287 = vmatprep.subr.mxu0 0.0
    %1288 = vmatpush2.msra.mxu0 0.0
    %1289 = vmatprep.subr.mxu0 0.0
    %1290 = vmatpush2.msra.mxu0 0.0
    %1291 = vmatprep.subr.mxu0 0.0
    %1292 = vmatpush2.msra.mxu0 0.0
    %1293 = vmatprep.subr.mxu0 0.0
    %1294 = vmatpush2.msra.mxu0 0.0
    %1295 = vmatprep.mubr.f32.mxu0 0.0
    %1296 = vmatmul.mubr.f32.gmra.mxu0 %v1200
    %v1297 = vpop.f32.mrf.mxu0
    %v1298 = vadd.f32 %v1229, %v1297
    %v1299 = vpop.f32.mrf.mxu0
    %1300 = vmatprep.mubr.f32.mxu0 0.0
    %1301 = vmatmul.mubr.f32.gmra.mxu0 %v1201
    %v1302 = vpop.f32.mrf.mxu0
    %v1303 = vadd.f32 %v1229, %v1302
    %v1304 = vpop.f32.mrf.mxu0
    %1305 = vmatprep.mubr.f32.mxu0 0.0
    %1306 = vmatmul.mubr.f32.gmra.mxu0 %v1202
    %v1307 = vpop.f32.mrf.mxu0
    %v1308 = vadd.f32 %v1229, %v1307
    %v1309 = vpop.f32.mrf.mxu0
    %1310 = vmatprep.mubr.f32.mxu0 0.0
    %1311 = vmatmul.mubr.f32.gmra.mxu0 %v1203
    %v1312 = vpop.f32.mrf.mxu0
    %v1313 = vadd.f32 %v1229, %v1312
    %v1314 = vpop.f32.mrf.mxu0
    %1315 = vmatprep.mubr.f32.mxu0 0.0
    %1316 = vmatmul.mubr.f32.gmra.mxu0 %v1204
    %v1317 = vpop.f32.mrf.mxu0
    %v1318 = vadd.f32 %v1229, %v1317
    %v1319 = vpop.f32.mrf.mxu0
    %1320 = vmatprep.mubr.f32.mxu0 0.0
    %1321 = vmatmul.mubr.f32.gmra.mxu0 %v1205
    %v1322 = vpop.f32.mrf.mxu0
    %v1323 = vadd.f32 %v1229, %v1322
    %v1324 = vpop.f32.mrf.mxu0
    %1325 = vmatprep.mubr.f32.mxu0 0.0
    %1326 = vmatmul.mubr.f32.gmra.mxu0 %v1206
    %v1327 = vpop.f32.mrf.mxu0
    %v1328 = vadd.f32 %v1229, %v1327
    %v1329 = vpop.f32.mrf.mxu0
    %1330 = vmatprep.mubr.f32.mxu0 0.0
    %1331 = vmatmul.mubr.f32.gmra.mxu0 %v1207
    %v1332 = vpop.f32.mrf.mxu0
    %v1333 = vadd.f32 %v1229, %v1332
    %v1334 = vpop.f32.mrf.mxu0
    %1335 = vdwg.mxu0
    %v1336 = vtanh.pop %v1298
    %v1337 = vtanh.pop %v1303
    %v1338 = vtanh.pop %v1308
    %v1339 = vtanh.pop %v1313
    %v1340 = vtanh.pop %v1318
    %v1341 = vtanh.pop %v1323
    %v1342 = vtanh.pop %v1328
    %v1343 = vtanh.pop %v1333
    %v1344 = vld [vmem:[%s6] sm:$0x1]
    %v1346 = vlaneseq
    %v1347 = vshrl.u32 %v1346, 7
    %v1348 = vsub.s32 0, %v1347
    %v1349 = vrot.slane %v1344, %v1348
    %v1351 = vmul.f32 %v1336, %v1349
    %v1352 = vmul.f32 %v1337, %v1349
    %v1353 = vmul.f32 %v1338, %v1349
    %v1354 = vmul.f32 %v1339, %v1349
    %v1355 = vmul.f32 %v1340, %v1349
    %v1356 = vmul.f32 %v1341, %v1349
    %v1357 = vmul.f32 %v1342, %v1349
    %v1358 = vmul.f32 %v1343, %v1349
    %1359 = vadd.xlane.f32.xlu0 %v1351
    %v1360 = vpop.xlane.xlu0 %1359
    %1361 = vadd.xlane.f32.xlu0 %v1352
    %v1362 = vpop.xlane.xlu0 %1361
    %1363 = vadd.xlane.f32.xlu0 %v1353
    %v1364 = vpop.xlane.xlu0 %1363
    %1365 = vadd.xlane.f32.xlu0 %v1354
    %v1366 = vpop.xlane.xlu0 %1365
    %1367 = vadd.xlane.f32.xlu0 %v1355
    %v1368 = vpop.xlane.xlu0 %1367
    %1369 = vadd.xlane.f32.xlu0 %v1356
    %v1370 = vpop.xlane.xlu0 %1369
    %1371 = vadd.xlane.f32.xlu0 %v1357
    %v1372 = vpop.xlane.xlu0 %1371
    %1373 = vadd.xlane.f32.xlu0 %v1358
    %v1374 = vpop.xlane.xlu0 %1373
    %v1375 = vld [vmem:[#allocation6] sm:$0xff]
    %v1376 = vmax.f32 %v1360, %v1368
    %v1377 = vmax.f32 %v1362, %v1370
    %v1378 = vmax.f32 %v1364, %v1372
    %v1379 = vmax.f32 %v1366, %v1374
    %v1380 = vmax.f32 %v1376, %v1377
    %v1381 = vmax.f32 %v1378, %v1379
    %v1382 = vmax.f32 %v1380, %v1381
    %v1383 = vmax.f32 %v1375, %v1382
    %v1384 = vsub.f32 %v1375, %v1383
    %v1385 = vmul.f32 %v1384, 1.442695
    %v1386 = vpow.pop %v1385
    %v1387 = vsub.f32 %v1360, %v1383
    %v1388 = vsub.f32 %v1362, %v1383
    %v1389 = vsub.f32 %v1364, %v1383
    %v1390 = vsub.f32 %v1366, %v1383
    %v1391 = vsub.f32 %v1368, %v1383
    %v1392 = vsub.f32 %v1370, %v1383
    %v1393 = vsub.f32 %v1372, %v1383
    %v1394 = vsub.f32 %v1374, %v1383
    %v1395 = vmul.f32 %v1387, 1.442695
    %v1396 = vpow.pop %v1395
    %v1397 = vmul.f32 %v1388, 1.442695
    %v1398 = vpow.pop %v1397
    %v1399 = vmul.f32 %v1389, 1.442695
    %v1400 = vpow.pop %v1399
    %v1401 = vmul.f32 %v1390, 1.442695
    %v1402 = vpow.pop %v1401
    %v1403 = vmul.f32 %v1391, 1.442695
    %v1404 = vpow.pop %v1403
    %v1405 = vmul.f32 %v1392, 1.442695
    %v1406 = vpow.pop %v1405
    %v1407 = vmul.f32 %v1393, 1.442695
    %v1408 = vpow.pop %v1407
    %v1409 = vmul.f32 %v1394, 1.442695
    %v1410 = vpow.pop %v1409
    %v1411 = vld [vmem:[#allocation7] sm:$0xff]
    %v1412 = vmul.f32 %v1386, %v1411
    %vm1413 = vcmask 7168
    %v1414 = vsel %vm1413, %v1396, 0.0
    %v1415 = vsel %vm1413, %v1398, 0.0
    %v1416 = vadd.f32 %v1414, %v1415
    %v1417 = vsel %vm1413, %v1400, 0.0
    %v1418 = vadd.f32 %v1416, %v1417
    %v1419 = vsel %vm1413, %v1402, 0.0
    %v1420 = vadd.f32 %v1418, %v1419
    %v1421 = vsel %vm1413, %v1404, 0.0
    %v1422 = vadd.f32 %v1420, %v1421
    %v1423 = vsel %vm1413, %v1406, 0.0
    %v1424 = vadd.f32 %v1422, %v1423
    %v1425 = vsel %vm1413, %v1408, 0.0
    %v1426 = vadd.f32 %v1424, %v1425
    %v1427 = vsel %vm1413, %v1410, 0.0
    %v1428 = vadd.f32 %v1426, %v1427
    %v1429 = vadd.f32 %v1412, %v1428
    %1430 = vst.msk [vmem:[#allocation7] sm:$0xff] %vm1413, %v1429
    %v1431 = vld [vmem:[#allocation8] sm:$0xff]
    %1433 = vset.pattern.permute.xlu0 0
    %1434 = vperm.xlu0 %1433, %v1386
    %v1435 = vpop.permute.xlu0 %1434
    %v1437 = vmul.f32 %v1435, %v1431
    %1439 = vset.pattern.permute.xlu0 0
    %1440 = vperm.xlu0 %1439, %v1396
    %v1441 = vpop.permute.xlu0 %1440
    %1444 = vset.pattern.permute.xlu0 0
    %1445 = vperm.xlu0 %1444, %v1398
    %v1446 = vpop.permute.xlu0 %1445
    %1449 = vset.pattern.permute.xlu0 0
    %1450 = vperm.xlu0 %1449, %v1400
    %v1451 = vpop.permute.xlu0 %1450
    %1454 = vset.pattern.permute.xlu0 0
    %1455 = vperm.xlu0 %1454, %v1402
    %v1456 = vpop.permute.xlu0 %1455
    %1459 = vset.pattern.permute.xlu0 0
    %1460 = vperm.xlu0 %1459, %v1404
    %v1461 = vpop.permute.xlu0 %1460
    %1464 = vset.pattern.permute.xlu0 0
    %1465 = vperm.xlu0 %1464, %v1406
    %v1466 = vpop.permute.xlu0 %1465
    %1469 = vset.pattern.permute.xlu0 0
    %1470 = vperm.xlu0 %1469, %v1408
    %v1471 = vpop.permute.xlu0 %1470
    %1474 = vset.pattern.permute.xlu0 0
    %1475 = vperm.xlu0 %1474, %v1410
    %v1476 = vpop.permute.xlu0 %1475
    %v1478 = vmul.f32 %v1441, %v1200
    %v1479 = vmul.f32 %v1446, %v1201
    %v1480 = vmul.f32 %v1451, %v1202
    %v1481 = vmul.f32 %v1456, %v1203
    %v1482 = vmul.f32 %v1461, %v1204
    %v1483 = vmul.f32 %v1466, %v1205
    %v1484 = vmul.f32 %v1471, %v1206
    %v1485 = vmul.f32 %v1476, %v1207
    %v1486 = vadd.f32 %v1478, %v1479
    %v1487 = vadd.f32 %v1486, %v1480
    %v1488 = vadd.f32 %v1487, %v1481
    %v1489 = vadd.f32 %v1488, %v1482
    %v1490 = vadd.f32 %v1489, %v1483
    %v1491 = vadd.f32 %v1490, %v1484
    %v1492 = vadd.f32 %v1491, %v1485
    %v1493 = vadd.f32 %v1437, %v1492
    %1494 = vst [vmem:[#allocation8] sm:$0xff] %v1493
    %1495 = vst.msk [vmem:[#allocation6] sm:$0xff] %vm1413, %v1383
    // Predicated region
    $region57: #{tpu_custom_call.1} parent=1 // pred_check
      %p1496 = pneg %p62
    $region58: #{tpu_custom_call.1} parent=1 // pred_check_branch
      %1498 = sbr.rel (%p1496) target = $region60
    $region59: #{tpu_custom_call.1} parent=1 // pred_region
      %v1499 = vld [vmem:[#allocation8] sm:$0xff]
      %v1500 = vld [vmem:[#allocation7] sm:$0xff]
      %v1501 = vrcp.pop %v1500
      %1503 = vset.pattern.permute.xlu0 0
      %1504 = vperm.xlu0 %1503, %v1501
      %v1505 = vpop.permute.xlu0 %1504
      %v1507 = vmul.f32 %v1499, %v1505
      %v1508 = vld [vmem:[%s7] sm:$0x1]
      %v1510 = vlaneseq
      %v1511 = vshrl.u32 %v1510, 7
      %v1512 = vsub.s32 0, %v1511
      %v1513 = vrot.slane %v1508, %v1512
      %v1515 = vmul.f32 %v1507, %v1513
      %1516 = vadd.xlane.f32.xlu0 %v1515
      %v1517 = vpop.xlane.xlu0 %1516
      %v1518 = vld [vmem:[#allocation9] sm:$0x1]
      %v1520 = vlaneseq
      %v1521 = vshrl.u32 %v1520, 7
      %v1522 = vsub.s32 0, %v1521
      %v1523 = vrot.slane %v1518, %v1522
      %v1525 = vadd.f32 %v1517, %v1523
      %1526 = vst.msk [vmem:[%s9] sm:$0xff] %vm1413, %v1525
    $region60: #{tpu_custom_call.1} parent=1 // pred_fallthru
      _
    // Predicated region
    $region61: #{tpu_custom_call.1} parent=1 // pred_check
      _
    $region62: #{tpu_custom_call.1} parent=1 // pred_check_branch
      %1528 = sbr.rel (0) target = $region64
    $region63: #{tpu_custom_call.1} parent=1 // pred_region
      _
    $region64: #{tpu_custom_call.1} parent=1 // pred_fallthru
      _
    // Predicated region
    $region65: #{tpu_custom_call.1} parent=1 // pred_check
      _
    $region66: #{tpu_custom_call.1} parent=1 // pred_check_branch
      %1530 = sbr.rel (0) target = $region68
    $region67: #{tpu_custom_call.1} parent=1 // pred_region
      _
    $region68: #{tpu_custom_call.1} parent=1 // pred_fallthru
      _
    %1531 = vsyncpa [#allocation11], 1
    %1532 = vsyncpa [#allocation13], 1

</llo_original>
